<compile_context>
chip_gen: v7x
topology: tpu7x:2x2x1
jax: 0.10.0
libtpu: 0.0.40
codegen_flags: <defaults>
</compile_context>

<pallas_src>
import jax
import jax.numpy as jnp
from jax.experimental import pallas as pl
from jax.experimental.pallas import tpu as pltpu

EPS = 1e-5
L_IN, C_IN = 54, 5          # fixed by the module (Linear in-features = 384)
C1, C2 = 16, 32
L1 = L_IN - 2               # 52 after conv1
P1 = L1 // 2                # 26 after pool1
L2 = P1 - 2                 # 24 after conv2
P2 = L2 // 2                # 12 after pool2
HID = 32
FEAT_IN = C_IN * L_IN       # 270 (flat NCL input per sample)
HALF1 = 512                 # per-parity half width of conv1 output block (>= C1*P1 = 416)
HALF2 = 384                 # per-parity half width of conv2 output block (== C2*P2 = 384)


def _round_up(a, b):
    return (a + b - 1) // b * b


def _cdiv(a, b):
    return (a + b - 1) // b


def _banded_conv_matrix(w_scaled, l_in, half):
    """Lower Conv1d(kernel=3, valid) to a banded matmul.

    w_scaled: (c_out, c_in, 3) float32 (BN scale already folded in).
    Returns A of shape (c_in*l_in, 2*half) such that, for a sample flattened as
    x_flat[ci*l_in + li] (PyTorch NCL flatten), (x_flat @ A) at column
    (lo % 2)*half + co*(l_out//2) + lo//2 equals the conv output at (co, lo).
    Unused columns are zero.  The (parity, channel, lo//2) column order makes
    MaxPool1d(2,2) a max of the two contiguous column halves.
    """
    c_out, c_in, k = w_scaled.shape
    l_out = l_in - k + 1
    li = jnp.arange(l_in)
    lo = jnp.arange(l_out)
    d = li[:, None] - lo[None, :]                            # (l_in, l_out)
    valid = (d >= 0) & (d < k)
    taps = w_scaled[:, :, jnp.clip(d, 0, k - 1)]             # (c_out, c_in, l_in, l_out)
    taps = jnp.where(valid[None, None], taps, 0.0)
    band = jnp.transpose(taps, (1, 2, 0, 3)).reshape(c_in * l_in, c_out * l_out)
    col = jnp.arange(c_out * l_out)
    co, lo_c = col // l_out, col % l_out
    dst = (lo_c % 2) * half + co * (l_out // 2) + lo_c // 2  # unique destinations
    return jnp.zeros((c_in * l_in, 2 * half), jnp.float32).at[:, dst].set(band)


def _pooled_half_vector(per_channel, c_out, l_out, half):
    """Per-channel shift laid out on ONE pooled half (col = co*(l_out//2) + j).

    Because the same per-channel value applies to both parity halves of the banded-conv
    output, adding it AFTER the pooling max is exact (max(a,b)+t == max(a+t,b+t), and
    ReLU is monotone).  Unused columns stay zero.
    """
    cols = jnp.arange(c_out * (l_out // 2))
    co = cols // (l_out // 2)
    return jnp.zeros((half,), jnp.float32).at[cols].set(per_channel[co])


def _newcnn_kernel(x_ref, w1_ref, t1_ref, w2_ref, t2_ref,
                   wf1_ref, bf1_ref, wf2_ref, bf2_ref, out_ref):
    # In-kernel bf16 cast of the input block (no wrapper-side HBM cast pass).
    x = x_ref[...].astype(jnp.bfloat16)                               # (B_BLK, 270)

    # ---- Conv1d(5->16,k=3): one banded bf16 matmul, f32 accumulate --------------------
    h1 = jnp.dot(x, w1_ref[...], preferred_element_type=jnp.float32)  # (B_BLK, 1024)
    # MaxPool1d(2,2) first (lane-aligned max of the two parity halves), THEN the folded
    # BN/bias shift + ReLU (exact: shift is per-channel, identical for both halves).
    p1 = jnp.maximum(jnp.maximum(h1[:, :HALF1], h1[:, HALF1:]) + t1_ref[...], 0.0)
    p1 = p1.astype(jnp.bfloat16)                                      # (B_BLK, 512)

    # ---- Conv1d(16->32,k=3) -> pool -> shift -> ReLU ----------------------------------
    h2 = jnp.dot(p1, w2_ref[...], preferred_element_type=jnp.float32)  # (B_BLK, 768)
    p2 = jnp.maximum(jnp.maximum(h2[:, :HALF2], h2[:, HALF2:]) + t2_ref[...], 0.0)
    p2 = p2.astype(jnp.bfloat16)                                      # (B_BLK, 384)

    # ---- Flatten (already in PyTorch (C, L) order) + Linear(384,32) + ReLU ------------
    y = jnp.dot(p2, wf1_ref[...], preferred_element_type=jnp.float32) + bf1_ref[...]
    y = jnp.maximum(y, 0.0).astype(jnp.bfloat16)                      # (B_BLK, 32)

    # ---- Linear(32,1) + ReLU, as (1,32) @ (B_BLK,32)^T -> lane-dense (1, B_BLK) -------
    o = jax.lax.dot_general(wf2_ref[...], y, (((1,), (1,)), ((), ())),
                            preferred_element_type=jnp.float32) + bf2_ref[...]
    out_ref[...] = jnp.maximum(o, 0.0)


def lower_params(params):
    """Run ONCE per parameter set: fold BN (+ conv bias) and lower convs to banded
    matmuls, transpose/cast the linears.  Returns kernel-ready operands."""
    s1 = params["g1"] / jnp.sqrt(params["v1"] + EPS)
    s2 = params["g2"] / jnp.sqrt(params["v2"] + EPS)
    w1b = _banded_conv_matrix(params["w1"] * s1[:, None, None], L_IN, HALF1)     # (270, 1024)
    t1 = _pooled_half_vector(params["beta1"] + (params["b1"] - params["m1"]) * s1,
                             C1, L1, HALF1)[None, :]                             # (1, 512)
    w2b_core = _banded_conv_matrix(params["w2"] * s2[:, None, None], P1, HALF2)  # (416, 768)
    w2b = jnp.zeros((HALF1, 2 * HALF2), jnp.float32).at[:C1 * P1, :].set(w2b_core)
    t2 = _pooled_half_vector(params["beta2"] + (params["b2"] - params["m2"]) * s2,
                             C2, L2, HALF2)[None, :]                             # (1, 384)
    wf1 = params["fw1"].T                                                        # (384, 32)
    bf1 = params["fb1"][None, :]                                                 # (1, 32)
    wf2 = params["fw2"]                                                          # (1, 32)
    bf2 = params["fb2"][None, :]                                                 # (1, 1)
    return {
        "w1b": w1b.astype(jnp.bfloat16), "t1": t1,
        "w2b": w2b.astype(jnp.bfloat16), "t2": t2,
        "wf1": wf1.astype(jnp.bfloat16), "bf1": bf1,
        "wf2": wf2.astype(jnp.bfloat16), "bf2": bf2,
    }


def _choose_block(B, block_b):
    if B <= 256:
        return _round_up(B, 8)                    # one small block (M still MXU-friendly)
    if B <= 2 * block_b:
        # Guarantee >= 2 grid steps so both v7x TensorCores get work.
        return max(128, _round_up(_cdiv(B, 2), 128))
    return block_b


def newcnn_forward(x, lowered, *, block_b=512):
    """x: (B, 5, 54) float32 (PyTorch NCL layout). Returns (B, 1) float32.

    `lowered` is the output of lower_params(params) (computed once per parameter set).
    block_b=512 fits every generation's default scoped VMEM (v5e 16 MiB cap noted in
    the review); raise towards 1024 on v6e/v7x if desired.
    """
    B = x.shape[0]
    b_blk = _choose_block(B, block_b)
    b_pad = _round_up(B, b_blk)
    num_blocks = b_pad // b_blk

    # No wrapper-side cast: x stays f32 (reshape only); pad only if needed.
    x_flat = x.reshape(B, FEAT_IN)
    if b_pad != B:
        x_flat = jnp.pad(x_flat, ((0, b_pad - B), (0, 0)))

    const2d = lambda shape: pl.BlockSpec(shape, lambda b: (0, 0))
    out = pl.pallas_call(
        _newcnn_kernel,
        out_shape=jax.ShapeDtypeStruct((1, b_pad), jnp.float32),
        grid=(num_blocks,),
        in_specs=[
            pl.BlockSpec((b_blk, FEAT_IN), lambda b: (b, 0)),     # x block (f32)
            const2d((FEAT_IN, 2 * HALF1)), const2d((1, HALF1)),   # w1b, t1
            const2d((HALF1, 2 * HALF2)), const2d((1, HALF2)),     # w2b, t2
            const2d((HALF2, HID)), const2d((1, HID)),             # wf1, bf1
            const2d((1, HID)), const2d((1, 1)),                   # wf2, bf2
        ],
        out_specs=pl.BlockSpec((1, b_blk), lambda b: (0, b)),
        compiler_params=pltpu.CompilerParams(dimension_semantics=("parallel",)),
    )(x_flat, lowered["w1b"], lowered["t1"], lowered["w2b"], lowered["t2"],
      lowered["wf1"], lowered["bf1"], lowered["wf2"], lowered["bf2"])
    return out[0, :B].reshape(B, 1)


def init_params(key):
    ks = jax.random.split(key, 16)
    f32 = jnp.float32
    return {
        "w1": 0.2 * jax.random.normal(ks[0], (C1, C_IN, 3), f32),
        "b1": 0.1 * jax.random.normal(ks[1], (C1,), f32),
        "g1": 1.0 + 0.1 * jax.random.normal(ks[2], (C1,), f32),
        "beta1": 0.1 * jax.random.normal(ks[3], (C1,), f32),
        "m1": 0.1 * jax.random.normal(ks[4], (C1,), f32),
        "v1": jax.random.uniform(ks[5], (C1,), f32, 0.5, 1.5),
        "w2": 0.1 * jax.random.normal(ks[6], (C2, C1, 3), f32),
        "b2": 0.1 * jax.random.normal(ks[7], (C2,), f32),
        "g2": 1.0 + 0.1 * jax.random.normal(ks[8], (C2,), f32),
        "beta2": 0.1 * jax.random.normal(ks[9], (C2,), f32),
        "m2": 0.1 * jax.random.normal(ks[10], (C2,), f32),
        "v2": jax.random.uniform(ks[11], (C2,), f32, 0.5, 1.5),
        "fw1": 0.05 * jax.random.normal(ks[12], (HID, C2 * P2), f32),   # (32, 384)
        "fb1": 0.1 * jax.random.normal(ks[13], (HID,), f32),
        "fw2": 0.1 * jax.random.normal(ks[14], (1, HID), f32),
        "fb2": 0.1 * jax.random.normal(ks[15], (1,), f32),
    }


def ref_forward(x, p):
    """Pure-JAX reference mirroring the PyTorch forward (eval mode), NCL layout."""
    def bn(h, g, b, m, v):
        return (h - m[None, :, None]) / jnp.sqrt(v[None, :, None] + EPS) \
            * g[None, :, None] + b[None, :, None]

    h = jax.lax.conv_general_dilated(
        x, p["w1"], (1,), "VALID", dimension_numbers=("NCH", "OIH", "NCH"),
        precision=jax.lax.Precision.HIGHEST) + p["b1"][None, :, None]
    h = jax.nn.relu(bn(h, p["g1"], p["beta1"], p["m1"], p["v1"]))
    h = h.reshape(h.shape[0], h.shape[1], h.shape[2] // 2, 2).max(-1)
    h = jax.nn.relu(h)
    h = jax.lax.conv_general_dilated(
        h, p["w2"], (1,), "VALID", dimension_numbers=("NCH", "OIH", "NCH"),
        precision=jax.lax.Precision.HIGHEST) + p["b2"][None, :, None]
    h = jax.nn.relu(bn(h, p["g2"], p["beta2"], p["m2"], p["v2"]))
    h = h.reshape(h.shape[0], h.shape[1], h.shape[2] // 2, 2).max(-1)
    h = jax.nn.relu(h)
    f = h.reshape(h.shape[0], -1)                                   # (B, 384), (C,L) order
    y = jax.nn.relu(jnp.dot(f, p["fw1"].T, precision="highest") + p["fb1"])
    y = jax.nn.relu(jnp.dot(y, p["fw2"].T, precision="highest") + p["fb2"])
    return y


if __name__ == "__main__":
    key = jax.random.PRNGKey(0)
    k_x, k_p = jax.random.split(key)
    B = 2
    x = jax.random.normal(k_x, (B, C_IN, L_IN), jnp.float32)        # (2, 5, 54)
    params = init_params(k_p)

    lowered = lower_params(params)          # weight-lowering glue runs once, not per call
    out = newcnn_forward(x, lowered)
    out = jax.block_until_ready(out)

    ref = ref_forward(x, params)
    assert out.shape == (B, 1)
    # bf16 MXU operands vs the f32 HIGHEST-precision reference: ~1e-3 level differences.
    assert jnp.allclose(out, ref, rtol=2e-2, atol=2e-2), (out, ref)

    print("KERNEL_OK")
</pallas_src>

<mosaic_0001>
module attributes {stable_mosaic.version = 11 : i64} {
  func.func @_newcnn_kernel(%arg0: i32, %arg1: memref<8x270xf32, #tpu.memory_space<vmem>>, %arg2: memref<270x1024xbf16, #tpu.memory_space<vmem>>, %arg3: memref<1x512xf32, #tpu.memory_space<vmem>>, %arg4: memref<512x768xbf16, #tpu.memory_space<vmem>>, %arg5: memref<1x384xf32, #tpu.memory_space<vmem>>, %arg6: memref<384x32xbf16, #tpu.memory_space<vmem>>, %arg7: memref<1x32xf32, #tpu.memory_space<vmem>>, %arg8: memref<1x32xbf16, #tpu.memory_space<vmem>>, %arg9: memref<1x1xf32, #tpu.memory_space<vmem>>, %arg10: memref<1x8xf32, #tpu.memory_space<vmem>>) attributes {dimension_semantics = [#tpu.dimension_semantics<parallel>], iteration_bounds = array<i64: 1>, scalar_prefetch = 0 : i64, scratch_operands = 0 : i64, tpu.core_type = #tpu.core_type<tc>, window_params = [{transform_indices = @transform_0, window_bounds = array<i64: 8, 270>}, {pipeline_mode = #tpu.pipeline_mode<synchronous>, transform_indices = @transform_1, window_bounds = array<i64: 270, 1024>}, {pipeline_mode = #tpu.pipeline_mode<synchronous>, transform_indices = @transform_2, window_bounds = array<i64: 1, 512>}, {pipeline_mode = #tpu.pipeline_mode<synchronous>, transform_indices = @transform_3, window_bounds = array<i64: 512, 768>}, {pipeline_mode = #tpu.pipeline_mode<synchronous>, transform_indices = @transform_4, window_bounds = array<i64: 1, 384>}, {pipeline_mode = #tpu.pipeline_mode<synchronous>, transform_indices = @transform_5, window_bounds = array<i64: 384, 32>}, {pipeline_mode = #tpu.pipeline_mode<synchronous>, transform_indices = @transform_6, window_bounds = array<i64: 1, 32>}, {pipeline_mode = #tpu.pipeline_mode<synchronous>, transform_indices = @transform_7, window_bounds = array<i64: 1, 32>}, {pipeline_mode = #tpu.pipeline_mode<synchronous>, transform_indices = @transform_8, window_bounds = array<i64: 1, 1>}, {transform_indices = @transform_9, window_bounds = array<i64: 1, 8>}]} {
    %c0 = arith.constant 0 : index
    %c0_0 = arith.constant 0 : index
    %0 = vector.load %arg1[%c0, %c0_0] : memref<8x270xf32, #tpu.memory_space<vmem>>, vector<8x270xf32>
    %1 = arith.truncf %0 : vector<8x270xf32> to vector<8x270xbf16>
    %c0_1 = arith.constant 0 : index
    %c0_2 = arith.constant 0 : index
    %2 = vector.load %arg2[%c0_1, %c0_2] : memref<270x1024xbf16, #tpu.memory_space<vmem>>, vector<270x1024xbf16>
    %cst = arith.constant dense<0.000000e+00> : vector<8x1024xf32>
    %3 = tpu.matmul %1, %2, %cst {dimension_numbers = #tpu.dot_dimension_numbers<[1], [0], [0], [1], [0, 0, 1, 1], [], []>} : vector<8x270xbf16>, vector<270x1024xbf16>, vector<8x1024xf32> -> vector<8x1024xf32>
    %4 = vector.extract_strided_slice %3 {offsets = [0, 0], sizes = [8, 512], strides = [1, 1]} : vector<8x1024xf32> to vector<8x512xf32>
    %5 = vector.extract_strided_slice %3 {offsets = [0, 512], sizes = [8, 512], strides = [1, 1]} : vector<8x1024xf32> to vector<8x512xf32>
    %6 = arith.maximumf %4, %5 : vector<8x512xf32>
    %c0_3 = arith.constant 0 : index
    %c0_4 = arith.constant 0 : index
    %7 = vector.load %arg3[%c0_3, %c0_4] : memref<1x512xf32, #tpu.memory_space<vmem>>, vector<1x512xf32>
    %8 = vector.broadcast %7 : vector<1x512xf32> to vector<8x512xf32>
    %9 = arith.addf %6, %8 : vector<8x512xf32>
    %cst_5 = arith.constant 0.000000e+00 : f32
    %10 = vector.broadcast %cst_5 : f32 to vector<8x512xf32>
    %11 = arith.maximumf %9, %10 : vector<8x512xf32>
    %12 = arith.truncf %11 : vector<8x512xf32> to vector<8x512xbf16>
    %c0_6 = arith.constant 0 : index
    %c0_7 = arith.constant 0 : index
    %13 = vector.load %arg4[%c0_6, %c0_7] : memref<512x768xbf16, #tpu.memory_space<vmem>>, vector<512x768xbf16>
    %cst_8 = arith.constant dense<0.000000e+00> : vector<8x768xf32>
    %14 = tpu.matmul %12, %13, %cst_8 {dimension_numbers = #tpu.dot_dimension_numbers<[1], [0], [0], [1], [0, 0, 1, 1], [], []>} : vector<8x512xbf16>, vector<512x768xbf16>, vector<8x768xf32> -> vector<8x768xf32>
    %15 = vector.extract_strided_slice %14 {offsets = [0, 0], sizes = [8, 384], strides = [1, 1]} : vector<8x768xf32> to vector<8x384xf32>
    %16 = vector.extract_strided_slice %14 {offsets = [0, 384], sizes = [8, 384], strides = [1, 1]} : vector<8x768xf32> to vector<8x384xf32>
    %17 = arith.maximumf %15, %16 : vector<8x384xf32>
    %c0_9 = arith.constant 0 : index
    %c0_10 = arith.constant 0 : index
    %18 = vector.load %arg5[%c0_9, %c0_10] : memref<1x384xf32, #tpu.memory_space<vmem>>, vector<1x384xf32>
    %19 = vector.broadcast %18 : vector<1x384xf32> to vector<8x384xf32>
    %20 = arith.addf %17, %19 : vector<8x384xf32>
    %cst_11 = arith.constant 0.000000e+00 : f32
    %21 = vector.broadcast %cst_11 : f32 to vector<8x384xf32>
    %22 = arith.maximumf %20, %21 : vector<8x384xf32>
    %23 = arith.truncf %22 : vector<8x384xf32> to vector<8x384xbf16>
    %c0_12 = arith.constant 0 : index
    %c0_13 = arith.constant 0 : index
    %24 = vector.load %arg6[%c0_12, %c0_13] : memref<384x32xbf16, #tpu.memory_space<vmem>>, vector<384x32xbf16>
    %cst_14 = arith.constant dense<0.000000e+00> : vector<8x32xf32>
    %25 = tpu.matmul %23, %24, %cst_14 {dimension_numbers = #tpu.dot_dimension_numbers<[1], [0], [0], [1], [0, 0, 1, 1], [], []>} : vector<8x384xbf16>, vector<384x32xbf16>, vector<8x32xf32> -> vector<8x32xf32>
    %c0_15 = arith.constant 0 : index
    %c0_16 = arith.constant 0 : index
    %26 = vector.load %arg7[%c0_15, %c0_16] : memref<1x32xf32, #tpu.memory_space<vmem>>, vector<1x32xf32>
    %27 = vector.broadcast %26 : vector<1x32xf32> to vector<8x32xf32>
    %28 = arith.addf %25, %27 : vector<8x32xf32>
    %cst_17 = arith.constant 0.000000e+00 : f32
    %29 = vector.broadcast %cst_17 : f32 to vector<8x32xf32>
    %30 = arith.maximumf %28, %29 : vector<8x32xf32>
    %31 = arith.truncf %30 : vector<8x32xf32> to vector<8x32xbf16>
    %c0_18 = arith.constant 0 : index
    %c0_19 = arith.constant 0 : index
    %32 = vector.load %arg8[%c0_18, %c0_19] : memref<1x32xbf16, #tpu.memory_space<vmem>>, vector<1x32xbf16>
    %cst_20 = arith.constant dense<0.000000e+00> : vector<1x8xf32>
    %33 = tpu.matmul %32, %31, %cst_20 {dimension_numbers = #tpu.dot_dimension_numbers<[1], [1], [0], [0], [0, 0, 1, 0], [], []>} : vector<1x32xbf16>, vector<8x32xbf16>, vector<1x8xf32> -> vector<1x8xf32>
    %c0_21 = arith.constant 0 : index
    %c0_22 = arith.constant 0 : index
    %34 = vector.load %arg9[%c0_21, %c0_22] : memref<1x1xf32, #tpu.memory_space<vmem>>, vector<1x1xf32>
    %35 = vector.broadcast %34 : vector<1x1xf32> to vector<1x8xf32>
    %36 = arith.addf %33, %35 : vector<1x8xf32>
    %cst_23 = arith.constant 0.000000e+00 : f32
    %37 = vector.broadcast %cst_23 : f32 to vector<1x8xf32>
    %38 = arith.maximumf %36, %37 : vector<1x8xf32>
    %c0_24 = arith.constant 0 : index
    %c0_25 = arith.constant 0 : index
    %39 = vector.load %arg10[%c0_24, %c0_25] : memref<1x8xf32, #tpu.memory_space<vmem>>, vector<1x8xf32>
    tpu.vector_store %arg10[%c0_24, %c0_25], %38 {strides = array<i32>} : memref<1x8xf32, #tpu.memory_space<vmem>>, vector<1x8xf32>,
    return
  }
  func.func @transform_0(%arg0: i32) -> (i32, i32) {
    %c0_i32 = arith.constant 0 : i32
    %c0_i32_0 = arith.constant 0 : i32
    return %arg0, %c0_i32 : i32, i32
  }
  func.func @transform_1(%arg0: i32) -> (i32, i32) {
    %c0_i32 = arith.constant 0 : i32
    %c0_i32_0 = arith.constant 0 : i32
    %c0_i32_1 = arith.constant 0 : i32
    return %c0_i32, %c0_i32_0 : i32, i32
  }
  func.func @transform_2(%arg0: i32) -> (i32, i32) {
    %c0_i32 = arith.constant 0 : i32
    %c0_i32_0 = arith.constant 0 : i32
    %c0_i32_1 = arith.constant 0 : i32
    return %c0_i32, %c0_i32_0 : i32, i32
  }
  func.func @transform_3(%arg0: i32) -> (i32, i32) {
    %c0_i32 = arith.constant 0 : i32
    %c0_i32_0 = arith.constant 0 : i32
    %c0_i32_1 = arith.constant 0 : i32
    return %c0_i32, %c0_i32_0 : i32, i32
  }
  func.func @transform_4(%arg0: i32) -> (i32, i32) {
    %c0_i32 = arith.constant 0 : i32
    %c0_i32_0 = arith.constant 0 : i32
    %c0_i32_1 = arith.constant 0 : i32
    return %c0_i32, %c0_i32_0 : i32, i32
  }
  func.func @transform_5(%arg0: i32) -> (i32, i32) {
    %c0_i32 = arith.constant 0 : i32
    %c0_i32_0 = arith.constant 0 : i32
    %c0_i32_1 = arith.constant 0 : i32
    return %c0_i32, %c0_i32_0 : i32, i32
  }
  func.func @transform_6(%arg0: i32) -> (i32, i32) {
    %c0_i32 = arith.constant 0 : i32
    %c0_i32_0 = arith.constant 0 : i32
    %c0_i32_1 = arith.constant 0 : i32
    return %c0_i32, %c0_i32_0 : i32, i32
  }
  func.func @transform_7(%arg0: i32) -> (i32, i32) {
    %c0_i32 = arith.constant 0 : i32
    %c0_i32_0 = arith.constant 0 : i32
    %c0_i32_1 = arith.constant 0 : i32
    return %c0_i32, %c0_i32_0 : i32, i32
  }
  func.func @transform_8(%arg0: i32) -> (i32, i32) {
    %c0_i32 = arith.constant 0 : i32
    %c0_i32_0 = arith.constant 0 : i32
    %c0_i32_1 = arith.constant 0 : i32
    return %c0_i32, %c0_i32_0 : i32, i32
  }
  func.func @transform_9(%arg0: i32) -> (i32, i32) {
    %c0_i32 = arith.constant 0 : i32
    %c0_i32_0 = arith.constant 0 : i32
    return %c0_i32, %arg0 : i32, i32
  }
}

</mosaic_0001>

<llo_original>
// kernel: tpu_custom_call.1
$region0: #{tpu_custom_call.1}
  #allocation0 [shape = 'u32[]', space=smem, size = 0x4, offset = 0x4, fixed_abs, tag = 'smem constant byte address 0x4 - core index']
  #allocation1 [shape = 'u32[144,128]{1,0:T(1,128)}', space=vmem, size = 0x12000, scoped, tag = 'internal scratch']
  #allocation2 [shape = 'f32[1,1]{1,0:T(1,128)S(1)}', space=vmem, size = 0x200, scoped, tag = 'scoped memory for tpu_custom_call.1']
  %s0 = inlined_call_operand.vmem [shape: f32[8,270], index: 0, kind: input, shape index: {}]
  %s1 = inlined_call_operand.hbm [shape: bf16[270,1024], index: 1, kind: input, shape index: {}]
  %s2 = inlined_call_operand.vmem [shape: f32[1,512], index: 2, kind: input, shape index: {}]
  %s3 = inlined_call_operand.hbm [shape: bf16[512,768], index: 3, kind: input, shape index: {}]
  %s4 = inlined_call_operand.vmem [shape: f32[1,384], index: 4, kind: input, shape index: {}]
  %s5 = inlined_call_operand.vmem [shape: bf16[384,32], index: 5, kind: input, shape index: {}]
  %s6 = inlined_call_operand.vmem [shape: f32[1,32], index: 6, kind: input, shape index: {}]
  %s7 = inlined_call_operand.vmem [shape: bf16[1,32], index: 7, kind: input, shape index: {}]
  %s8 = inlined_call_operand.<no memory space> [shape: f32[1,1], index: 8, kind: input, shape index: {}]
  %s9 = inlined_call_operand.hbm [shape: f32[1,8], index: 9, kind: output, shape index: {}]
  %s10 = sld [smem:[#allocation0]]
  $region54: #{tpu_custom_call.1} parent=0
    _
  %s12 = ssub.s32 1, %s10
  %s13 = scalar_select 0, %s12, %s10
  %v14 = vstv %s8
  %15 = vst [vmem:[#allocation2] sm:$0x1] %v14
  $region1: #{tpu_custom_call.1} parent=0
    #allocation3 [shape = 'u8[557056]{0}', space=vmem, size = 0x88000, scoped, tag = 'input window, operand 1, single buffered']
    #allocation4 [shape = 's32[1]{0}', space=sflag, size = 0x4, scoped, tag = 'scoped memory for tpu_custom_call.1']
    #allocation5 [shape = 's32[1]{0}', space=sflag, size = 0x4, scoped, tag = 'scoped memory for tpu_custom_call.1']
    #allocation6 [shape = 'u8[786432]{0}', space=vmem, size = 0xc0000, scoped, tag = 'input window, operand 3, single buffered']
    #allocation7 [shape = 's32[1]{0}', space=sflag, size = 0x4, scoped, tag = 'scoped memory for tpu_custom_call.1']
    #allocation8 [shape = 'u8[512]{0}', space=vmem, size = 0x400, scoped, tag = 'output window, operand 0, single buffered']
    %16 = vsyncpa [#allocation4], 0
    %17 = vsyncpa [#allocation7], 0
    %18 = vsyncpa [#allocation5], 0
    // Predicated region
    $region2: #{tpu_custom_call.1} parent=1 // pred_check
      _
    $region3: #{tpu_custom_call.1} parent=1 // pred_check_branch
      %20 = sbr.rel (0) target = $region5
    $region4: #{tpu_custom_call.1} parent=1 // pred_region
      _
    $region5: #{tpu_custom_call.1} parent=1 // pred_fallthru
      _
    // Predicated region
    $region6: #{tpu_custom_call.1} parent=1 // pred_check
      _
    $region7: #{tpu_custom_call.1} parent=1 // pred_check_branch
      %22 = sbr.rel (0) target = $region9
    $region8: #{tpu_custom_call.1} parent=1 // pred_region
      %s24 = ssub.s32 17408, 17408
      %25 = vsyncadd [#allocation4], %s24
      %s26 = sshll.u32 [#allocation3], 4
      %s27 = int_to_ptr.vmem [resolvable:$true] %s26
      %32 = dma.hbm_to_vmem [thread:$0]  %s1, 17408, %s27, [#allocation4], 512, 512, 32
    $region9: #{tpu_custom_call.1} parent=1 // pred_fallthru
      _
    // Predicated region
    $region10: #{tpu_custom_call.1} parent=1 // pred_check
      _
    $region11: #{tpu_custom_call.1} parent=1 // pred_check_branch
      %34 = sbr.rel (0) target = $region13
    $region12: #{tpu_custom_call.1} parent=1 // pred_region
      _
    $region13: #{tpu_custom_call.1} parent=1 // pred_fallthru
      _
    // Predicated region
    $region14: #{tpu_custom_call.1} parent=1 // pred_check
      _
    $region15: #{tpu_custom_call.1} parent=1 // pred_check_branch
      %36 = sbr.rel (0) target = $region17
    $region16: #{tpu_custom_call.1} parent=1 // pred_region
      %s38 = ssub.s32 24576, 24576
      %39 = vsyncadd [#allocation7], %s38
      %s40 = sshll.u32 [#allocation6], 4
      %s41 = int_to_ptr.vmem [resolvable:$true] %s40
      %46 = dma.hbm_to_vmem [thread:$0]  %s3, 24576, %s41, [#allocation7], 384, 384, 24
    $region17: #{tpu_custom_call.1} parent=1 // pred_fallthru
      _
    // Predicated region
    $region18: #{tpu_custom_call.1} parent=1 // pred_check
      _
    $region19: #{tpu_custom_call.1} parent=1 // pred_check_branch
      %48 = sbr.rel (0) target = $region21
    $region20: #{tpu_custom_call.1} parent=1 // pred_region
      _
    $region21: #{tpu_custom_call.1} parent=1 // pred_fallthru
      _
    // Predicated region
    $region22: #{tpu_custom_call.1} parent=1 // pred_check
      _
    $region23: #{tpu_custom_call.1} parent=1 // pred_check_branch
      %50 = sbr.rel (0) target = $region25
    $region24: #{tpu_custom_call.1} parent=1 // pred_region
      _
    $region25: #{tpu_custom_call.1} parent=1 // pred_fallthru
      _
    // Predicated region
    $region26: #{tpu_custom_call.1} parent=1 // pred_check
      _
    $region27: #{tpu_custom_call.1} parent=1 // pred_check_branch
      %52 = sbr.rel (0) target = $region29
    $region28: #{tpu_custom_call.1} parent=1 // pred_region
      _
    $region29: #{tpu_custom_call.1} parent=1 // pred_fallthru
      _
    // Predicated region
    $region30: #{tpu_custom_call.1} parent=1 // pred_check
      _
    $region31: #{tpu_custom_call.1} parent=1 // pred_check_branch
      %54 = sbr.rel (0) target = $region33
    $region32: #{tpu_custom_call.1} parent=1 // pred_region
      _
    $region33: #{tpu_custom_call.1} parent=1 // pred_fallthru
      _
    // Predicated region
    $region34: #{tpu_custom_call.1} parent=1 // pred_check
      _
    $region35: #{tpu_custom_call.1} parent=1 // pred_check_branch
      %56 = sbr.rel (0) target = $region37
    $region36: #{tpu_custom_call.1} parent=1 // pred_region
      _
    $region37: #{tpu_custom_call.1} parent=1 // pred_fallthru
      _
    // Predicated region
    $region38: #{tpu_custom_call.1} parent=1 // pred_check
      _
    $region39: #{tpu_custom_call.1} parent=1 // pred_check_branch
      %58 = sbr.rel (0) target = $region41
    $region40: #{tpu_custom_call.1} parent=1 // pred_region
      %59 = dma.done [#allocation4], 17408
    $region41: #{tpu_custom_call.1} parent=1 // pred_fallthru
      _
    // Predicated region
    $region42: #{tpu_custom_call.1} parent=1 // pred_check
      _
    $region43: #{tpu_custom_call.1} parent=1 // pred_check_branch
      %61 = sbr.rel (0) target = $region45
    $region44: #{tpu_custom_call.1} parent=1 // pred_region
      %62 = dma.done [#allocation7], 24576
    $region45: #{tpu_custom_call.1} parent=1 // pred_fallthru
      _
    %v64 = vld [vmem:[%s0] sm:$0xff]
    %v65 = vld [vmem:[%s0 + $0x8] sm:$0xff]
    %v66 = vld [vmem:[%s0 + $0x10] sm:$0xff]
    %v67 = vpack.c.bf16 %v64, %v64
    %v68 = vpack.c.bf16 %v65, %v65
    %v69 = vpack.c.bf16 %v66, %v66
    %v70 = vld [vmem:[#allocation3] sm:$0xff]
    %v71 = vld [vmem:[#allocation3 + $0x8] sm:$0xff]
    %v72 = vld [vmem:[#allocation3 + $0x10] sm:$0xff]
    %v73 = vld [vmem:[#allocation3 + $0x18] sm:$0xff]
    %v74 = vld [vmem:[#allocation3 + $0x20] sm:$0xff]
    %v75 = vld [vmem:[#allocation3 + $0x28] sm:$0xff]
    %v76 = vld [vmem:[#allocation3 + $0x30] sm:$0xff]
    %v77 = vld [vmem:[#allocation3 + $0x38] sm:$0xff]
    %v78 = vld [vmem:[#allocation3 + $0x40] sm:$0xff]
    %v79 = vld [vmem:[#allocation3 + $0x48] sm:$0xff]
    %v80 = vld [vmem:[#allocation3 + $0x50] sm:$0xff]
    %v81 = vld [vmem:[#allocation3 + $0x58] sm:$0xff]
    %v82 = vld [vmem:[#allocation3 + $0x60] sm:$0xff]
    %v83 = vld [vmem:[#allocation3 + $0x68] sm:$0xff]
    %v84 = vld [vmem:[#allocation3 + $0x70] sm:$0xff]
    %v85 = vld [vmem:[#allocation3 + $0x78] sm:$0xff]
    %v86 = vld [vmem:[#allocation3 + $0x80] sm:$0xff]
    %v87 = vld [vmem:[#allocation3 + $0x88] sm:$0xff]
    %v88 = vld [vmem:[#allocation3 + $0x90] sm:$0xff]
    %v89 = vld [vmem:[#allocation3 + $0x98] sm:$0xff]
    %v90 = vld [vmem:[#allocation3 + $0xa0] sm:$0xff]
    %v91 = vld [vmem:[#allocation3 + $0xa8] sm:$0xff]
    %v92 = vld [vmem:[#allocation3 + $0xb0] sm:$0xff]
    %v93 = vld [vmem:[#allocation3 + $0xb8] sm:$0xff]
    %v94 = vld [vmem:[#allocation3 + $0xc0] sm:$0xff]
    %v95 = vld [vmem:[#allocation3 + $0xc8] sm:$0xff]
    %v96 = vld [vmem:[#allocation3 + $0xd0] sm:$0xff]
    %v97 = vld [vmem:[#allocation3 + $0xd8] sm:$0xff]
    %v98 = vld [vmem:[#allocation3 + $0xe0] sm:$0xff]
    %v99 = vld [vmem:[#allocation3 + $0xe8] sm:$0xff]
    %v100 = vld [vmem:[#allocation3 + $0xf0] sm:$0xff]
    %v101 = vld [vmem:[#allocation3 + $0xf8] sm:$0xff]
    %v102 = vld [vmem:[#allocation3 + $0x100] sm:$0xff]
    %v103 = vld [vmem:[#allocation3 + $0x108] sm:$0xff]
    %v104 = vld [vmem:[#allocation3 + $0x110] sm:$0xff]
    %v105 = vld [vmem:[#allocation3 + $0x118] sm:$0xff]
    %v106 = vld [vmem:[#allocation3 + $0x120] sm:$0xff]
    %v107 = vld [vmem:[#allocation3 + $0x128] sm:$0xff]
    %v108 = vld [vmem:[#allocation3 + $0x130] sm:$0xff]
    %v109 = vld [vmem:[#allocation3 + $0x138] sm:$0xff]
    %v110 = vld [vmem:[#allocation3 + $0x140] sm:$0xff]
    %v111 = vld [vmem:[#allocation3 + $0x148] sm:$0xff]
    %v112 = vld [vmem:[#allocation3 + $0x150] sm:$0xff]
    %v113 = vld [vmem:[#allocation3 + $0x158] sm:$0xff]
    %v114 = vld [vmem:[#allocation3 + $0x160] sm:$0xff]
    %v115 = vld [vmem:[#allocation3 + $0x168] sm:$0xff]
    %v116 = vld [vmem:[#allocation3 + $0x170] sm:$0xff]
    %v117 = vld [vmem:[#allocation3 + $0x178] sm:$0xff]
    %v118 = vld [vmem:[#allocation3 + $0x180] sm:$0xff]
    %v119 = vld [vmem:[#allocation3 + $0x188] sm:$0xff]
    %v120 = vld [vmem:[#allocation3 + $0x190] sm:$0xff]
    %v121 = vld [vmem:[#allocation3 + $0x198] sm:$0xff]
    %v122 = vld [vmem:[#allocation3 + $0x1a0] sm:$0xff]
    %v123 = vld [vmem:[#allocation3 + $0x1a8] sm:$0xff]
    %v124 = vld [vmem:[#allocation3 + $0x1b0] sm:$0xff]
    %v125 = vld [vmem:[#allocation3 + $0x1b8] sm:$0xff]
    %v126 = vld [vmem:[#allocation3 + $0x1c0] sm:$0xff]
    %v127 = vld [vmem:[#allocation3 + $0x1c8] sm:$0xff]
    %v128 = vld [vmem:[#allocation3 + $0x1d0] sm:$0xff]
    %v129 = vld [vmem:[#allocation3 + $0x1d8] sm:$0xff]
    %v130 = vld [vmem:[#allocation3 + $0x1e0] sm:$0xff]
    %v131 = vld [vmem:[#allocation3 + $0x1e8] sm:$0xff]
    %v132 = vld [vmem:[#allocation3 + $0x1f0] sm:$0xff]
    %v133 = vld [vmem:[#allocation3 + $0x1f8] sm:$0xff]
    %v134 = vld [vmem:[#allocation3 + $0x200] sm:$0xff]
    %v135 = vld [vmem:[#allocation3 + $0x208] sm:$0xff]
    %v136 = vld [vmem:[#allocation3 + $0x210] sm:$0xff]
    %v137 = vld [vmem:[#allocation3 + $0x218] sm:$0xff]
    %v138 = vld [vmem:[#allocation3 + $0x220] sm:$0xff]
    %v139 = vld [vmem:[#allocation3 + $0x228] sm:$0xff]
    %v140 = vld [vmem:[#allocation3 + $0x230] sm:$0xff]
    %v141 = vld [vmem:[#allocation3 + $0x238] sm:$0xff]
    %v142 = vld [vmem:[#allocation3 + $0x240] sm:$0xff]
    %v143 = vld [vmem:[#allocation3 + $0x248] sm:$0xff]
    %v144 = vld [vmem:[#allocation3 + $0x250] sm:$0xff]
    %v145 = vld [vmem:[#allocation3 + $0x258] sm:$0xff]
    %v146 = vld [vmem:[#allocation3 + $0x260] sm:$0xff]
    %v147 = vld [vmem:[#allocation3 + $0x268] sm:$0xff]
    %v148 = vld [vmem:[#allocation3 + $0x270] sm:$0xff]
    %v149 = vld [vmem:[#allocation3 + $0x278] sm:$0xff]
    %v150 = vld [vmem:[#allocation3 + $0x280] sm:$0xff]
    %v151 = vld [vmem:[#allocation3 + $0x288] sm:$0xff]
    %v152 = vld [vmem:[#allocation3 + $0x290] sm:$0xff]
    %v153 = vld [vmem:[#allocation3 + $0x298] sm:$0xff]
    %v154 = vld [vmem:[#allocation3 + $0x2a0] sm:$0xff]
    %v155 = vld [vmem:[#allocation3 + $0x2a8] sm:$0xff]
    %v156 = vld [vmem:[#allocation3 + $0x2b0] sm:$0xff]
    %v157 = vld [vmem:[#allocation3 + $0x2b8] sm:$0xff]
    %v158 = vld [vmem:[#allocation3 + $0x2c0] sm:$0xff]
    %v159 = vld [vmem:[#allocation3 + $0x2c8] sm:$0xff]
    %v160 = vld [vmem:[#allocation3 + $0x2d0] sm:$0xff]
    %v161 = vld [vmem:[#allocation3 + $0x2d8] sm:$0xff]
    %v162 = vld [vmem:[#allocation3 + $0x2e0] sm:$0xff]
    %v163 = vld [vmem:[#allocation3 + $0x2e8] sm:$0xff]
    %v164 = vld [vmem:[#allocation3 + $0x2f0] sm:$0xff]
    %v165 = vld [vmem:[#allocation3 + $0x2f8] sm:$0xff]
    %v166 = vld [vmem:[#allocation3 + $0x300] sm:$0xff]
    %v167 = vld [vmem:[#allocation3 + $0x308] sm:$0xff]
    %v168 = vld [vmem:[#allocation3 + $0x310] sm:$0xff]
    %v169 = vld [vmem:[#allocation3 + $0x318] sm:$0xff]
    %v170 = vld [vmem:[#allocation3 + $0x320] sm:$0xff]
    %v171 = vld [vmem:[#allocation3 + $0x328] sm:$0xff]
    %v172 = vld [vmem:[#allocation3 + $0x330] sm:$0xff]
    %v173 = vld [vmem:[#allocation3 + $0x338] sm:$0xff]
    %v174 = vld [vmem:[#allocation3 + $0x340] sm:$0xff]
    %v175 = vld [vmem:[#allocation3 + $0x348] sm:$0xff]
    %v176 = vld [vmem:[#allocation3 + $0x350] sm:$0xff]
    %v177 = vld [vmem:[#allocation3 + $0x358] sm:$0xff]
    %v178 = vld [vmem:[#allocation3 + $0x360] sm:$0xff]
    %v179 = vld [vmem:[#allocation3 + $0x368] sm:$0xff]
    %v180 = vld [vmem:[#allocation3 + $0x370] sm:$0xff]
    %v181 = vld [vmem:[#allocation3 + $0x378] sm:$0xff]
    %v182 = vld [vmem:[#allocation3 + $0x380] sm:$0xff]
    %v183 = vld [vmem:[#allocation3 + $0x388] sm:$0xff]
    %v184 = vld [vmem:[#allocation3 + $0x390] sm:$0xff]
    %v185 = vld [vmem:[#allocation3 + $0x398] sm:$0xff]
    %v186 = vld [vmem:[#allocation3 + $0x3a0] sm:$0xff]
    %v187 = vld [vmem:[#allocation3 + $0x3a8] sm:$0xff]
    %v188 = vld [vmem:[#allocation3 + $0x3b0] sm:$0xff]
    %v189 = vld [vmem:[#allocation3 + $0x3b8] sm:$0xff]
    %v190 = vld [vmem:[#allocation3 + $0x3c0] sm:$0xff]
    %v191 = vld [vmem:[#allocation3 + $0x3c8] sm:$0xff]
    %v192 = vld [vmem:[#allocation3 + $0x3d0] sm:$0xff]
    %v193 = vld [vmem:[#allocation3 + $0x3d8] sm:$0xff]
    %v194 = vld [vmem:[#allocation3 + $0x3e0] sm:$0xff]
    %v195 = vld [vmem:[#allocation3 + $0x3e8] sm:$0xff]
    %v196 = vld [vmem:[#allocation3 + $0x3f0] sm:$0xff]
    %v197 = vld [vmem:[#allocation3 + $0x3f8] sm:$0xff]
    %v198 = vld [vmem:[#allocation3 + $0x400] sm:$0xff]
    %v199 = vld [vmem:[#allocation3 + $0x408] sm:$0xff]
    %v200 = vld [vmem:[#allocation3 + $0x410] sm:$0xff]
    %v201 = vld [vmem:[#allocation3 + $0x418] sm:$0xff]
    %v202 = vld [vmem:[#allocation3 + $0x420] sm:$0x77]
    %v203 = vld [vmem:[#allocation3 + $0x428] sm:$0x77]
    %v204 = vld [vmem:[#allocation3 + $0x430] sm:$0x77]
    %v205 = vld [vmem:[#allocation3 + $0x438] sm:$0x77]
    %v342 = vunpack.c.l.b16 %v70
    %v343 = vunpack.c.h.b16 %v70
    %v344 = vunpack.c.l.b16 %v71
    %v345 = vunpack.c.h.b16 %v71
    %v346 = vunpack.c.l.b16 %v72
    %v347 = vunpack.c.h.b16 %v72
    %v348 = vunpack.c.l.b16 %v73
    %v349 = vunpack.c.h.b16 %v73
    %v350 = vunpack.c.l.b16 %v74
    %v351 = vunpack.c.h.b16 %v74
    %v352 = vunpack.c.l.b16 %v75
    %v353 = vunpack.c.h.b16 %v75
    %v354 = vunpack.c.l.b16 %v76
    %v355 = vunpack.c.h.b16 %v76
    %v356 = vunpack.c.l.b16 %v77
    %v357 = vunpack.c.h.b16 %v77
    %v358 = vunpack.c.l.b16 %v78
    %v359 = vunpack.c.h.b16 %v78
    %v360 = vunpack.c.l.b16 %v79
    %v361 = vunpack.c.h.b16 %v79
    %v362 = vunpack.c.l.b16 %v80
    %v363 = vunpack.c.h.b16 %v80
    %v364 = vunpack.c.l.b16 %v81
    %v365 = vunpack.c.h.b16 %v81
    %v366 = vunpack.c.l.b16 %v82
    %v367 = vunpack.c.h.b16 %v82
    %v368 = vunpack.c.l.b16 %v83
    %v369 = vunpack.c.h.b16 %v83
    %v370 = vunpack.c.l.b16 %v84
    %v371 = vunpack.c.h.b16 %v84
    %v372 = vunpack.c.l.b16 %v85
    %v373 = vunpack.c.h.b16 %v85
    %v374 = vunpack.c.l.b16 %v86
    %v375 = vunpack.c.h.b16 %v86
    %v376 = vunpack.c.l.b16 %v87
    %v377 = vunpack.c.h.b16 %v87
    %v378 = vunpack.c.l.b16 %v88
    %v379 = vunpack.c.h.b16 %v88
    %v380 = vunpack.c.l.b16 %v89
    %v381 = vunpack.c.h.b16 %v89
    %v382 = vunpack.c.l.b16 %v90
    %v383 = vunpack.c.h.b16 %v90
    %v384 = vunpack.c.l.b16 %v91
    %v385 = vunpack.c.h.b16 %v91
    %v386 = vunpack.c.l.b16 %v92
    %v387 = vunpack.c.h.b16 %v92
    %v388 = vunpack.c.l.b16 %v93
    %v389 = vunpack.c.h.b16 %v93
    %v390 = vunpack.c.l.b16 %v94
    %v391 = vunpack.c.h.b16 %v94
    %v392 = vunpack.c.l.b16 %v95
    %v393 = vunpack.c.h.b16 %v95
    %v394 = vunpack.c.l.b16 %v96
    %v395 = vunpack.c.h.b16 %v96
    %v396 = vunpack.c.l.b16 %v97
    %v397 = vunpack.c.h.b16 %v97
    %v398 = vunpack.c.l.b16 %v98
    %v399 = vunpack.c.h.b16 %v98
    %v400 = vunpack.c.l.b16 %v99
    %v401 = vunpack.c.h.b16 %v99
    %v402 = vunpack.c.l.b16 %v100
    %v403 = vunpack.c.h.b16 %v100
    %v404 = vunpack.c.l.b16 %v101
    %v405 = vunpack.c.h.b16 %v101
    %v406 = vunpack.c.l.b16 %v102
    %v407 = vunpack.c.h.b16 %v102
    %v408 = vunpack.c.l.b16 %v103
    %v409 = vunpack.c.h.b16 %v103
    %v410 = vunpack.c.l.b16 %v104
    %v411 = vunpack.c.h.b16 %v104
    %v412 = vunpack.c.l.b16 %v105
    %v413 = vunpack.c.h.b16 %v105
    %v414 = vunpack.c.l.b16 %v106
    %v415 = vunpack.c.h.b16 %v106
    %v416 = vunpack.c.l.b16 %v107
    %v417 = vunpack.c.h.b16 %v107
    %v418 = vunpack.c.l.b16 %v108
    %v419 = vunpack.c.h.b16 %v108
    %v420 = vunpack.c.l.b16 %v109
    %v421 = vunpack.c.h.b16 %v109
    %v422 = vunpack.c.l.b16 %v110
    %v423 = vunpack.c.h.b16 %v110
    %v424 = vunpack.c.l.b16 %v111
    %v425 = vunpack.c.h.b16 %v111
    %v426 = vunpack.c.l.b16 %v112
    %v427 = vunpack.c.h.b16 %v112
    %v428 = vunpack.c.l.b16 %v113
    %v429 = vunpack.c.h.b16 %v113
    %v430 = vunpack.c.l.b16 %v114
    %v431 = vunpack.c.h.b16 %v114
    %v432 = vunpack.c.l.b16 %v115
    %v433 = vunpack.c.h.b16 %v115
    %v434 = vunpack.c.l.b16 %v116
    %v435 = vunpack.c.h.b16 %v116
    %v436 = vunpack.c.l.b16 %v117
    %v437 = vunpack.c.h.b16 %v117
    %v438 = vunpack.c.l.b16 %v118
    %v439 = vunpack.c.h.b16 %v118
    %v440 = vunpack.c.l.b16 %v119
    %v441 = vunpack.c.h.b16 %v119
    %v442 = vunpack.c.l.b16 %v120
    %v443 = vunpack.c.h.b16 %v120
    %v444 = vunpack.c.l.b16 %v121
    %v445 = vunpack.c.h.b16 %v121
    %v446 = vunpack.c.l.b16 %v122
    %v447 = vunpack.c.h.b16 %v122
    %v448 = vunpack.c.l.b16 %v123
    %v449 = vunpack.c.h.b16 %v123
    %v450 = vunpack.c.l.b16 %v124
    %v451 = vunpack.c.h.b16 %v124
    %v452 = vunpack.c.l.b16 %v125
    %v453 = vunpack.c.h.b16 %v125
    %v454 = vunpack.c.l.b16 %v126
    %v455 = vunpack.c.h.b16 %v126
    %v456 = vunpack.c.l.b16 %v127
    %v457 = vunpack.c.h.b16 %v127
    %v458 = vunpack.c.l.b16 %v128
    %v459 = vunpack.c.h.b16 %v128
    %v460 = vunpack.c.l.b16 %v129
    %v461 = vunpack.c.h.b16 %v129
    %v462 = vunpack.c.l.b16 %v130
    %v463 = vunpack.c.h.b16 %v130
    %v464 = vunpack.c.l.b16 %v131
    %v465 = vunpack.c.h.b16 %v131
    %v466 = vunpack.c.l.b16 %v132
    %v467 = vunpack.c.h.b16 %v132
    %v468 = vunpack.c.l.b16 %v133
    %v469 = vunpack.c.h.b16 %v133
    %v470 = vunpack.c.l.b16 %v134
    %v471 = vunpack.c.h.b16 %v134
    %v472 = vunpack.c.l.b16 %v135
    %v473 = vunpack.c.h.b16 %v135
    %v474 = vunpack.c.l.b16 %v136
    %v475 = vunpack.c.h.b16 %v136
    %v476 = vunpack.c.l.b16 %v137
    %v477 = vunpack.c.h.b16 %v137
    %v478 = vunpack.c.l.b16 %v138
    %v479 = vunpack.c.h.b16 %v138
    %v480 = vunpack.c.l.b16 %v139
    %v481 = vunpack.c.h.b16 %v139
    %v482 = vunpack.c.l.b16 %v140
    %v483 = vunpack.c.h.b16 %v140
    %v484 = vunpack.c.l.b16 %v141
    %v485 = vunpack.c.h.b16 %v141
    %v486 = vunpack.c.l.b16 %v142
    %v487 = vunpack.c.h.b16 %v142
    %v488 = vunpack.c.l.b16 %v143
    %v489 = vunpack.c.h.b16 %v143
    %v490 = vunpack.c.l.b16 %v144
    %v491 = vunpack.c.h.b16 %v144
    %v492 = vunpack.c.l.b16 %v145
    %v493 = vunpack.c.h.b16 %v145
    %v494 = vunpack.c.l.b16 %v146
    %v495 = vunpack.c.h.b16 %v146
    %v496 = vunpack.c.l.b16 %v147
    %v497 = vunpack.c.h.b16 %v147
    %v498 = vunpack.c.l.b16 %v148
    %v499 = vunpack.c.h.b16 %v148
    %v500 = vunpack.c.l.b16 %v149
    %v501 = vunpack.c.h.b16 %v149
    %v502 = vunpack.c.l.b16 %v150
    %v503 = vunpack.c.h.b16 %v150
    %v504 = vunpack.c.l.b16 %v151
    %v505 = vunpack.c.h.b16 %v151
    %v506 = vunpack.c.l.b16 %v152
    %v507 = vunpack.c.h.b16 %v152
    %v508 = vunpack.c.l.b16 %v153
    %v509 = vunpack.c.h.b16 %v153
    %v510 = vunpack.c.l.b16 %v154
    %v511 = vunpack.c.h.b16 %v154
    %v512 = vunpack.c.l.b16 %v155
    %v513 = vunpack.c.h.b16 %v155
    %v514 = vunpack.c.l.b16 %v156
    %v515 = vunpack.c.h.b16 %v156
    %v516 = vunpack.c.l.b16 %v157
    %v517 = vunpack.c.h.b16 %v157
    %v518 = vunpack.c.l.b16 %v158
    %v519 = vunpack.c.h.b16 %v158
    %v520 = vunpack.c.l.b16 %v159
    %v521 = vunpack.c.h.b16 %v159
    %v522 = vunpack.c.l.b16 %v160
    %v523 = vunpack.c.h.b16 %v160
    %v524 = vunpack.c.l.b16 %v161
    %v525 = vunpack.c.h.b16 %v161
    %v526 = vunpack.c.l.b16 %v162
    %v527 = vunpack.c.h.b16 %v162
    %v528 = vunpack.c.l.b16 %v163
    %v529 = vunpack.c.h.b16 %v163
    %v530 = vunpack.c.l.b16 %v164
    %v531 = vunpack.c.h.b16 %v164
    %v532 = vunpack.c.l.b16 %v165
    %v533 = vunpack.c.h.b16 %v165
    %v534 = vunpack.c.l.b16 %v166
    %v535 = vunpack.c.h.b16 %v166
    %v536 = vunpack.c.l.b16 %v167
    %v537 = vunpack.c.h.b16 %v167
    %v538 = vunpack.c.l.b16 %v168
    %v539 = vunpack.c.h.b16 %v168
    %v540 = vunpack.c.l.b16 %v169
    %v541 = vunpack.c.h.b16 %v169
    %v542 = vunpack.c.l.b16 %v170
    %v543 = vunpack.c.h.b16 %v170
    %v544 = vunpack.c.l.b16 %v171
    %v545 = vunpack.c.h.b16 %v171
    %v546 = vunpack.c.l.b16 %v172
    %v547 = vunpack.c.h.b16 %v172
    %v548 = vunpack.c.l.b16 %v173
    %v549 = vunpack.c.h.b16 %v173
    %v550 = vunpack.c.l.b16 %v174
    %v551 = vunpack.c.h.b16 %v174
    %v552 = vunpack.c.l.b16 %v175
    %v553 = vunpack.c.h.b16 %v175
    %v554 = vunpack.c.l.b16 %v176
    %v555 = vunpack.c.h.b16 %v176
    %v556 = vunpack.c.l.b16 %v177
    %v557 = vunpack.c.h.b16 %v177
    %v558 = vunpack.c.l.b16 %v178
    %v559 = vunpack.c.h.b16 %v178
    %v560 = vunpack.c.l.b16 %v179
    %v561 = vunpack.c.h.b16 %v179
    %v562 = vunpack.c.l.b16 %v180
    %v563 = vunpack.c.h.b16 %v180
    %v564 = vunpack.c.l.b16 %v181
    %v565 = vunpack.c.h.b16 %v181
    %v566 = vunpack.c.l.b16 %v182
    %v567 = vunpack.c.h.b16 %v182
    %v568 = vunpack.c.l.b16 %v183
    %v569 = vunpack.c.h.b16 %v183
    %v570 = vunpack.c.l.b16 %v184
    %v571 = vunpack.c.h.b16 %v184
    %v572 = vunpack.c.l.b16 %v185
    %v573 = vunpack.c.h.b16 %v185
    %v574 = vunpack.c.l.b16 %v186
    %v575 = vunpack.c.h.b16 %v186
    %v576 = vunpack.c.l.b16 %v187
    %v577 = vunpack.c.h.b16 %v187
    %v578 = vunpack.c.l.b16 %v188
    %v579 = vunpack.c.h.b16 %v188
    %v580 = vunpack.c.l.b16 %v189
    %v581 = vunpack.c.h.b16 %v189
    %v582 = vunpack.c.l.b16 %v190
    %v583 = vunpack.c.h.b16 %v190
    %v584 = vunpack.c.l.b16 %v191
    %v585 = vunpack.c.h.b16 %v191
    %v586 = vunpack.c.l.b16 %v192
    %v587 = vunpack.c.h.b16 %v192
    %v588 = vunpack.c.l.b16 %v193
    %v589 = vunpack.c.h.b16 %v193
    %v590 = vunpack.c.l.b16 %v194
    %v591 = vunpack.c.h.b16 %v194
    %v592 = vunpack.c.l.b16 %v195
    %v593 = vunpack.c.h.b16 %v195
    %v594 = vunpack.c.l.b16 %v196
    %v595 = vunpack.c.h.b16 %v196
    %v596 = vunpack.c.l.b16 %v197
    %v597 = vunpack.c.h.b16 %v197
    %v598 = vunpack.c.l.b16 %v198
    %v599 = vunpack.c.h.b16 %v198
    %v600 = vunpack.c.l.b16 %v199
    %v601 = vunpack.c.h.b16 %v199
    %v602 = vunpack.c.l.b16 %v200
    %v603 = vunpack.c.h.b16 %v200
    %v604 = vunpack.c.l.b16 %v201
    %v605 = vunpack.c.h.b16 %v201
    %v606 = vunpack.c.l.b16 %v202
    %v607 = vunpack.c.h.b16 %v202
    %v608 = vunpack.c.l.b16 %v203
    %v609 = vunpack.c.h.b16 %v203
    %v610 = vunpack.c.l.b16 %v204
    %v611 = vunpack.c.h.b16 %v204
    %v612 = vunpack.c.l.b16 %v205
    %v613 = vunpack.c.h.b16 %v205
    %v614 = vpack.c.b16 %v350, %v342
    %v615 = vpack.c.b16 %v351, %v343
    %v616 = vpack.c.b16 %v352, %v344
    %v617 = vpack.c.b16 %v353, %v345
    %v618 = vpack.c.b16 %v354, %v346
    %v619 = vpack.c.b16 %v355, %v347
    %v620 = vpack.c.b16 %v356, %v348
    %v621 = vpack.c.b16 %v357, %v349
    %v622 = vpack.c.b16 %v366, %v358
    %v623 = vpack.c.b16 %v367, %v359
    %v624 = vpack.c.b16 %v368, %v360
    %v625 = vpack.c.b16 %v369, %v361
    %v626 = vpack.c.b16 %v370, %v362
    %v627 = vpack.c.b16 %v371, %v363
    %v628 = vpack.c.b16 %v372, %v364
    %v629 = vpack.c.b16 %v373, %v365
    %v630 = vpack.c.b16 %v382, %v374
    %v631 = vpack.c.b16 %v383, %v375
    %v632 = vpack.c.b16 %v384, %v376
    %v633 = vpack.c.b16 %v385, %v377
    %v634 = vpack.c.b16 %v386, %v378
    %v635 = vpack.c.b16 %v387, %v379
    %v636 = vpack.c.b16 %v388, %v380
    %v637 = vpack.c.b16 %v389, %v381
    %v638 = vpack.c.b16 %v398, %v390
    %v639 = vpack.c.b16 %v399, %v391
    %v640 = vpack.c.b16 %v400, %v392
    %v641 = vpack.c.b16 %v401, %v393
    %v642 = vpack.c.b16 %v402, %v394
    %v643 = vpack.c.b16 %v403, %v395
    %v644 = vpack.c.b16 %v404, %v396
    %v645 = vpack.c.b16 %v405, %v397
    %v646 = vpack.c.b16 %v414, %v406
    %v647 = vpack.c.b16 %v415, %v407
    %v648 = vpack.c.b16 %v416, %v408
    %v649 = vpack.c.b16 %v417, %v409
    %v650 = vpack.c.b16 %v418, %v410
    %v651 = vpack.c.b16 %v419, %v411
    %v652 = vpack.c.b16 %v420, %v412
    %v653 = vpack.c.b16 %v421, %v413
    %v654 = vpack.c.b16 %v430, %v422
    %v655 = vpack.c.b16 %v431, %v423
    %v656 = vpack.c.b16 %v432, %v424
    %v657 = vpack.c.b16 %v433, %v425
    %v658 = vpack.c.b16 %v434, %v426
    %v659 = vpack.c.b16 %v435, %v427
    %v660 = vpack.c.b16 %v436, %v428
    %v661 = vpack.c.b16 %v437, %v429
    %v662 = vpack.c.b16 %v446, %v438
    %v663 = vpack.c.b16 %v447, %v439
    %v664 = vpack.c.b16 %v448, %v440
    %v665 = vpack.c.b16 %v449, %v441
    %v666 = vpack.c.b16 %v450, %v442
    %v667 = vpack.c.b16 %v451, %v443
    %v668 = vpack.c.b16 %v452, %v444
    %v669 = vpack.c.b16 %v453, %v445
    %v670 = vpack.c.b16 %v462, %v454
    %v671 = vpack.c.b16 %v463, %v455
    %v672 = vpack.c.b16 %v464, %v456
    %v673 = vpack.c.b16 %v465, %v457
    %v674 = vpack.c.b16 %v466, %v458
    %v675 = vpack.c.b16 %v467, %v459
    %v676 = vpack.c.b16 %v468, %v460
    %v677 = vpack.c.b16 %v469, %v461
    %v678 = vpack.c.b16 %v478, %v470
    %v679 = vpack.c.b16 %v479, %v471
    %v680 = vpack.c.b16 %v480, %v472
    %v681 = vpack.c.b16 %v481, %v473
    %v682 = vpack.c.b16 %v482, %v474
    %v683 = vpack.c.b16 %v483, %v475
    %v684 = vpack.c.b16 %v484, %v476
    %v685 = vpack.c.b16 %v485, %v477
    %v686 = vpack.c.b16 %v494, %v486
    %v687 = vpack.c.b16 %v495, %v487
    %v688 = vpack.c.b16 %v496, %v488
    %v689 = vpack.c.b16 %v497, %v489
    %v690 = vpack.c.b16 %v498, %v490
    %v691 = vpack.c.b16 %v499, %v491
    %v692 = vpack.c.b16 %v500, %v492
    %v693 = vpack.c.b16 %v501, %v493
    %v694 = vpack.c.b16 %v510, %v502
    %v695 = vpack.c.b16 %v511, %v503
    %v696 = vpack.c.b16 %v512, %v504
    %v697 = vpack.c.b16 %v513, %v505
    %v698 = vpack.c.b16 %v514, %v506
    %v699 = vpack.c.b16 %v515, %v507
    %v700 = vpack.c.b16 %v516, %v508
    %v701 = vpack.c.b16 %v517, %v509
    %v702 = vpack.c.b16 %v526, %v518
    %v703 = vpack.c.b16 %v527, %v519
    %v704 = vpack.c.b16 %v528, %v520
    %v705 = vpack.c.b16 %v529, %v521
    %v706 = vpack.c.b16 %v530, %v522
    %v707 = vpack.c.b16 %v531, %v523
    %v708 = vpack.c.b16 %v532, %v524
    %v709 = vpack.c.b16 %v533, %v525
    %v710 = vpack.c.b16 %v542, %v534
    %v711 = vpack.c.b16 %v543, %v535
    %v712 = vpack.c.b16 %v544, %v536
    %v713 = vpack.c.b16 %v545, %v537
    %v714 = vpack.c.b16 %v546, %v538
    %v715 = vpack.c.b16 %v547, %v539
    %v716 = vpack.c.b16 %v548, %v540
    %v717 = vpack.c.b16 %v549, %v541
    %v718 = vpack.c.b16 %v558, %v550
    %v719 = vpack.c.b16 %v559, %v551
    %v720 = vpack.c.b16 %v560, %v552
    %v721 = vpack.c.b16 %v561, %v553
    %v722 = vpack.c.b16 %v562, %v554
    %v723 = vpack.c.b16 %v563, %v555
    %v724 = vpack.c.b16 %v564, %v556
    %v725 = vpack.c.b16 %v565, %v557
    %v726 = vpack.c.b16 %v574, %v566
    %v727 = vpack.c.b16 %v575, %v567
    %v728 = vpack.c.b16 %v576, %v568
    %v729 = vpack.c.b16 %v577, %v569
    %v730 = vpack.c.b16 %v578, %v570
    %v731 = vpack.c.b16 %v579, %v571
    %v732 = vpack.c.b16 %v580, %v572
    %v733 = vpack.c.b16 %v581, %v573
    %v734 = vpack.c.b16 %v590, %v582
    %v735 = vpack.c.b16 %v591, %v583
    %v736 = vpack.c.b16 %v592, %v584
    %v737 = vpack.c.b16 %v593, %v585
    %v738 = vpack.c.b16 %v594, %v586
    %v739 = vpack.c.b16 %v595, %v587
    %v740 = vpack.c.b16 %v596, %v588
    %v741 = vpack.c.b16 %v597, %v589
    %v742 = vpack.c.b16 %v606, %v598
    %v743 = vpack.c.b16 %v607, %v599
    %v744 = vpack.c.b16 %v608, %v600
    %v745 = vpack.c.b16 %v609, %v601
    %v746 = vpack.c.b16 %v610, %v602
    %v747 = vpack.c.b16 %v611, %v603
    %v748 = vpack.c.b16 %v612, %v604
    %v749 = vpack.c.b16 %v613, %v605
    %vm878 = vcmask 113664
    %v880 = vsel %vm878, %v69, 0
    %vm882 = vcmask 1046528
    %v884 = vsel %vm882, %v742, 0
    %v887 = vsel %vm882, %v743, 0
    %v890 = vsel %vm882, %v744, 0
    %v893 = vsel %vm882, %v745, 0
    %v896 = vsel %vm882, %v746, 0
    %v899 = vsel %vm882, %v747, 0
    %v902 = vsel %vm882, %v748, 0
    %v905 = vsel %vm882, %v749, 0
    %907 = vmatprep.subr.bf16.mxu0 %v615
    %908 = vmatpush1.bf16.msra.mxu0 %v614
    %909 = vmatprep.subr.bf16.mxu0 %v623
    %910 = vmatpush1.bf16.msra.mxu0 %v622
    %911 = vmatprep.subr.bf16.mxu0 %v631
    %912 = vmatpush1.bf16.msra.mxu0 %v630
    %913 = vmatprep.subr.bf16.mxu0 %v639
    %914 = vmatpush1.bf16.msra.mxu0 %v638
    %915 = vmatprep.subr.bf16.mxu0 %v647
    %916 = vmatpush1.bf16.msra.mxu0 %v646
    %917 = vmatprep.subr.bf16.mxu0 %v655
    %918 = vmatpush1.bf16.msra.mxu0 %v654
    %919 = vmatprep.subr.bf16.mxu0 %v663
    %920 = vmatpush1.bf16.msra.mxu0 %v662
    %921 = vmatprep.subr.bf16.mxu0 %v671
    %922 = vmatpush1.bf16.msra.mxu0 %v670
    %923 = vmatprep.subr.bf16.mxu0 %v679
    %924 = vmatpush1.bf16.msra.mxu0 %v678
    %925 = vmatprep.subr.bf16.mxu0 %v687
    %926 = vmatpush1.bf16.msra.mxu0 %v686
    %927 = vmatprep.subr.bf16.mxu0 %v695
    %928 = vmatpush1.bf16.msra.mxu0 %v694
    %929 = vmatprep.subr.bf16.mxu0 %v703
    %930 = vmatpush1.bf16.msra.mxu0 %v702
    %931 = vmatprep.subr.bf16.mxu0 %v711
    %932 = vmatpush1.bf16.msra.mxu0 %v710
    %933 = vmatprep.subr.bf16.mxu0 %v719
    %934 = vmatpush1.bf16.msra.mxu0 %v718
    %935 = vmatprep.subr.bf16.mxu0 %v727
    %936 = vmatpush1.bf16.msra.mxu0 %v726
    %937 = vmatprep.subr.bf16.mxu0 %v735
    %938 = vmatpush1.bf16.msra.mxu0 %v734
    %939 = vmatprep.mubr.bf16.mxu0 %v68
    %940 = vmatmul.mubr.bf16.gmra.mrb[0].mxu0 %v67
    %v941 = vpop.f32.mrb[0].mxu0
    %v942 = vadd.f32 0.0, %v941
    %v943 = vpop.f32.mrb[0].mxu0
    %v944 = vadd.f32 0.0, %v943
    %v945 = vpop.f32.mrb[0].mxu0
    %v946 = vpop.f32.mrb[0].mxu0
    %947 = vdwg.mxu0
    %948 = vmatprep.subr.bf16.mxu0 %v887
    %949 = vmatpush1.bf16.msra.mxu0 %v884
    %950 = vmatprep.subr.bf16.mxu0 0
    %951 = vmatpush1.bf16.msra.mxu0 0
    %952 = vmatprep.subr.bf16.mxu0 0
    %953 = vmatpush1.bf16.msra.mxu0 0
    %954 = vmatprep.subr.bf16.mxu0 0
    %955 = vmatpush1.bf16.msra.mxu0 0
    %956 = vmatprep.subr.bf16.mxu0 0
    %957 = vmatpush1.bf16.msra.mxu0 0
    %958 = vmatprep.subr.bf16.mxu0 0
    %959 = vmatpush1.bf16.msra.mxu0 0
    %960 = vmatprep.subr.bf16.mxu0 0
    %961 = vmatpush1.bf16.msra.mxu0 0
    %962 = vmatprep.subr.bf16.mxu0 0
    %963 = vmatpush1.bf16.msra.mxu0 0
    %964 = vmatprep.subr.bf16.mxu0 0
    %965 = vmatpush1.bf16.msra.mxu0 0
    %966 = vmatprep.subr.bf16.mxu0 0
    %967 = vmatpush1.bf16.msra.mxu0 0
    %968 = vmatprep.subr.bf16.mxu0 0
    %969 = vmatpush1.bf16.msra.mxu0 0
    %970 = vmatprep.subr.bf16.mxu0 0
    %971 = vmatpush1.bf16.msra.mxu0 0
    %972 = vmatprep.subr.bf16.mxu0 0
    %973 = vmatpush1.bf16.msra.mxu0 0
    %974 = vmatprep.subr.bf16.mxu0 0
    %975 = vmatpush1.bf16.msra.mxu0 0
    %976 = vmatprep.subr.bf16.mxu0 0
    %977 = vmatpush1.bf16.msra.mxu0 0
    %978 = vmatprep.subr.bf16.mxu0 0
    %979 = vmatpush1.bf16.msra.mxu0 0
    %980 = vmatprep.mubr.bf16.mxu0 0
    %981 = vmatmul.mubr.bf16.gmra.mrb[0].mxu0 %v880
    %v982 = vpop.f32.mrb[0].mxu0
    %v983 = vadd.f32 %v942, %v982
    %v984 = vpop.f32.mrb[0].mxu0
    %v985 = vadd.f32 %v944, %v984
    %v986 = vpop.f32.mrb[0].mxu0
    %v987 = vpop.f32.mrb[0].mxu0
    %988 = vdwg.mxu0
    %989 = vmatprep.subr.bf16.mxu0 %v617
    %990 = vmatpush1.bf16.msra.mxu0 %v616
    %991 = vmatprep.subr.bf16.mxu0 %v625
    %992 = vmatpush1.bf16.msra.mxu0 %v624
    %993 = vmatprep.subr.bf16.mxu0 %v633
    %994 = vmatpush1.bf16.msra.mxu0 %v632
    %995 = vmatprep.subr.bf16.mxu0 %v641
    %996 = vmatpush1.bf16.msra.mxu0 %v640
    %997 = vmatprep.subr.bf16.mxu0 %v649
    %998 = vmatpush1.bf16.msra.mxu0 %v648
    %999 = vmatprep.subr.bf16.mxu0 %v657
    %1000 = vmatpush1.bf16.msra.mxu0 %v656
    %1001 = vmatprep.subr.bf16.mxu0 %v665
    %1002 = vmatpush1.bf16.msra.mxu0 %v664
    %1003 = vmatprep.subr.bf16.mxu0 %v673
    %1004 = vmatpush1.bf16.msra.mxu0 %v672
    %1005 = vmatprep.subr.bf16.mxu0 %v681
    %1006 = vmatpush1.bf16.msra.mxu0 %v680
    %1007 = vmatprep.subr.bf16.mxu0 %v689
    %1008 = vmatpush1.bf16.msra.mxu0 %v688
    %1009 = vmatprep.subr.bf16.mxu0 %v697
    %1010 = vmatpush1.bf16.msra.mxu0 %v696
    %1011 = vmatprep.subr.bf16.mxu0 %v705
    %1012 = vmatpush1.bf16.msra.mxu0 %v704
    %1013 = vmatprep.subr.bf16.mxu0 %v713
    %1014 = vmatpush1.bf16.msra.mxu0 %v712
    %1015 = vmatprep.subr.bf16.mxu0 %v721
    %1016 = vmatpush1.bf16.msra.mxu0 %v720
    %1017 = vmatprep.subr.bf16.mxu0 %v729
    %1018 = vmatpush1.bf16.msra.mxu0 %v728
    %1019 = vmatprep.subr.bf16.mxu0 %v737
    %1020 = vmatpush1.bf16.msra.mxu0 %v736
    %1021 = vmatprep.mubr.bf16.mxu0 %v68
    %1022 = vmatmul.mubr.bf16.gmra.mrb[0].mxu0 %v67
    %v1023 = vpop.f32.mrb[0].mxu0
    %v1024 = vadd.f32 0.0, %v1023
    %v1025 = vpop.f32.mrb[0].mxu0
    %v1026 = vadd.f32 0.0, %v1025
    %v1027 = vpop.f32.mrb[0].mxu0
    %v1028 = vpop.f32.mrb[0].mxu0
    %1029 = vdwg.mxu0
    %1030 = vmatprep.subr.bf16.mxu0 %v893
    %1031 = vmatpush1.bf16.msra.mxu0 %v890
    %1032 = vmatprep.subr.bf16.mxu0 0
    %1033 = vmatpush1.bf16.msra.mxu0 0
    %1034 = vmatprep.subr.bf16.mxu0 0
    %1035 = vmatpush1.bf16.msra.mxu0 0
    %1036 = vmatprep.subr.bf16.mxu0 0
    %1037 = vmatpush1.bf16.msra.mxu0 0
    %1038 = vmatprep.subr.bf16.mxu0 0
    %1039 = vmatpush1.bf16.msra.mxu0 0
    %1040 = vmatprep.subr.bf16.mxu0 0
    %1041 = vmatpush1.bf16.msra.mxu0 0
    %1042 = vmatprep.subr.bf16.mxu0 0
    %1043 = vmatpush1.bf16.msra.mxu0 0
    %1044 = vmatprep.subr.bf16.mxu0 0
    %1045 = vmatpush1.bf16.msra.mxu0 0
    %1046 = vmatprep.subr.bf16.mxu0 0
    %1047 = vmatpush1.bf16.msra.mxu0 0
    %1048 = vmatprep.subr.bf16.mxu0 0
    %1049 = vmatpush1.bf16.msra.mxu0 0
    %1050 = vmatprep.subr.bf16.mxu0 0
    %1051 = vmatpush1.bf16.msra.mxu0 0
    %1052 = vmatprep.subr.bf16.mxu0 0
    %1053 = vmatpush1.bf16.msra.mxu0 0
    %1054 = vmatprep.subr.bf16.mxu0 0
    %1055 = vmatpush1.bf16.msra.mxu0 0
    %1056 = vmatprep.subr.bf16.mxu0 0
    %1057 = vmatpush1.bf16.msra.mxu0 0
    %1058 = vmatprep.subr.bf16.mxu0 0
    %1059 = vmatpush1.bf16.msra.mxu0 0
    %1060 = vmatprep.subr.bf16.mxu0 0
    %1061 = vmatpush1.bf16.msra.mxu0 0
    %1062 = vmatprep.mubr.bf16.mxu0 0
    %1063 = vmatmul.mubr.bf16.gmra.mrb[0].mxu0 %v880
    %v1064 = vpop.f32.mrb[0].mxu0
    %v1065 = vadd.f32 %v1024, %v1064
    %v1066 = vpop.f32.mrb[0].mxu0
    %v1067 = vadd.f32 %v1026, %v1066
    %v1068 = vpop.f32.mrb[0].mxu0
    %v1069 = vpop.f32.mrb[0].mxu0
    %1070 = vdwg.mxu0
    %1071 = vmatprep.subr.bf16.mxu0 %v619
    %1072 = vmatpush1.bf16.msra.mxu0 %v618
    %1073 = vmatprep.subr.bf16.mxu0 %v627
    %1074 = vmatpush1.bf16.msra.mxu0 %v626
    %1075 = vmatprep.subr.bf16.mxu0 %v635
    %1076 = vmatpush1.bf16.msra.mxu0 %v634
    %1077 = vmatprep.subr.bf16.mxu0 %v643
    %1078 = vmatpush1.bf16.msra.mxu0 %v642
    %1079 = vmatprep.subr.bf16.mxu0 %v651
    %1080 = vmatpush1.bf16.msra.mxu0 %v650
    %1081 = vmatprep.subr.bf16.mxu0 %v659
    %1082 = vmatpush1.bf16.msra.mxu0 %v658
    %1083 = vmatprep.subr.bf16.mxu0 %v667
    %1084 = vmatpush1.bf16.msra.mxu0 %v666
    %1085 = vmatprep.subr.bf16.mxu0 %v675
    %1086 = vmatpush1.bf16.msra.mxu0 %v674
    %1087 = vmatprep.subr.bf16.mxu0 %v683
    %1088 = vmatpush1.bf16.msra.mxu0 %v682
    %1089 = vmatprep.subr.bf16.mxu0 %v691
    %1090 = vmatpush1.bf16.msra.mxu0 %v690
    %1091 = vmatprep.subr.bf16.mxu0 %v699
    %1092 = vmatpush1.bf16.msra.mxu0 %v698
    %1093 = vmatprep.subr.bf16.mxu0 %v707
    %1094 = vmatpush1.bf16.msra.mxu0 %v706
    %1095 = vmatprep.subr.bf16.mxu0 %v715
    %1096 = vmatpush1.bf16.msra.mxu0 %v714
    %1097 = vmatprep.subr.bf16.mxu0 %v723
    %1098 = vmatpush1.bf16.msra.mxu0 %v722
    %1099 = vmatprep.subr.bf16.mxu0 %v731
    %1100 = vmatpush1.bf16.msra.mxu0 %v730
    %1101 = vmatprep.subr.bf16.mxu0 %v739
    %1102 = vmatpush1.bf16.msra.mxu0 %v738
    %1103 = vmatprep.mubr.bf16.mxu0 %v68
    %1104 = vmatmul.mubr.bf16.gmra.mrb[0].mxu0 %v67
    %v1105 = vpop.f32.mrb[0].mxu0
    %v1106 = vadd.f32 0.0, %v1105
    %v1107 = vpop.f32.mrb[0].mxu0
    %v1108 = vadd.f32 0.0, %v1107
    %v1109 = vpop.f32.mrb[0].mxu0
    %v1110 = vpop.f32.mrb[0].mxu0
    %1111 = vdwg.mxu0
    %1112 = vmatprep.subr.bf16.mxu0 %v899
    %1113 = vmatpush1.bf16.msra.mxu0 %v896
    %1114 = vmatprep.subr.bf16.mxu0 0
    %1115 = vmatpush1.bf16.msra.mxu0 0
    %1116 = vmatprep.subr.bf16.mxu0 0
    %1117 = vmatpush1.bf16.msra.mxu0 0
    %1118 = vmatprep.subr.bf16.mxu0 0
    %1119 = vmatpush1.bf16.msra.mxu0 0
    %1120 = vmatprep.subr.bf16.mxu0 0
    %1121 = vmatpush1.bf16.msra.mxu0 0
    %1122 = vmatprep.subr.bf16.mxu0 0
    %1123 = vmatpush1.bf16.msra.mxu0 0
    %1124 = vmatprep.subr.bf16.mxu0 0
    %1125 = vmatpush1.bf16.msra.mxu0 0
    %1126 = vmatprep.subr.bf16.mxu0 0
    %1127 = vmatpush1.bf16.msra.mxu0 0
    %1128 = vmatprep.subr.bf16.mxu0 0
    %1129 = vmatpush1.bf16.msra.mxu0 0
    %1130 = vmatprep.subr.bf16.mxu0 0
    %1131 = vmatpush1.bf16.msra.mxu0 0
    %1132 = vmatprep.subr.bf16.mxu0 0
    %1133 = vmatpush1.bf16.msra.mxu0 0
    %1134 = vmatprep.subr.bf16.mxu0 0
    %1135 = vmatpush1.bf16.msra.mxu0 0
    %1136 = vmatprep.subr.bf16.mxu0 0
    %1137 = vmatpush1.bf16.msra.mxu0 0
    %1138 = vmatprep.subr.bf16.mxu0 0
    %1139 = vmatpush1.bf16.msra.mxu0 0
    %1140 = vmatprep.subr.bf16.mxu0 0
    %1141 = vmatpush1.bf16.msra.mxu0 0
    %1142 = vmatprep.subr.bf16.mxu0 0
    %1143 = vmatpush1.bf16.msra.mxu0 0
    %1144 = vmatprep.mubr.bf16.mxu0 0
    %1145 = vmatmul.mubr.bf16.gmra.mrb[0].mxu0 %v880
    %v1146 = vpop.f32.mrb[0].mxu0
    %v1147 = vadd.f32 %v1106, %v1146
    %v1148 = vpop.f32.mrb[0].mxu0
    %v1149 = vadd.f32 %v1108, %v1148
    %v1150 = vpop.f32.mrb[0].mxu0
    %v1151 = vpop.f32.mrb[0].mxu0
    %1152 = vdwg.mxu0
    %1153 = vmatprep.subr.bf16.mxu0 %v621
    %1154 = vmatpush1.bf16.msra.mxu0 %v620
    %1155 = vmatprep.subr.bf16.mxu0 %v629
    %1156 = vmatpush1.bf16.msra.mxu0 %v628
    %1157 = vmatprep.subr.bf16.mxu0 %v637
    %1158 = vmatpush1.bf16.msra.mxu0 %v636
    %1159 = vmatprep.subr.bf16.mxu0 %v645
    %1160 = vmatpush1.bf16.msra.mxu0 %v644
    %1161 = vmatprep.subr.bf16.mxu0 %v653
    %1162 = vmatpush1.bf16.msra.mxu0 %v652
    %1163 = vmatprep.subr.bf16.mxu0 %v661
    %1164 = vmatpush1.bf16.msra.mxu0 %v660
    %1165 = vmatprep.subr.bf16.mxu0 %v669
    %1166 = vmatpush1.bf16.msra.mxu0 %v668
    %1167 = vmatprep.subr.bf16.mxu0 %v677
    %1168 = vmatpush1.bf16.msra.mxu0 %v676
    %1169 = vmatprep.subr.bf16.mxu0 %v685
    %1170 = vmatpush1.bf16.msra.mxu0 %v684
    %1171 = vmatprep.subr.bf16.mxu0 %v693
    %1172 = vmatpush1.bf16.msra.mxu0 %v692
    %1173 = vmatprep.subr.bf16.mxu0 %v701
    %1174 = vmatpush1.bf16.msra.mxu0 %v700
    %1175 = vmatprep.subr.bf16.mxu0 %v709
    %1176 = vmatpush1.bf16.msra.mxu0 %v708
    %1177 = vmatprep.subr.bf16.mxu0 %v717
    %1178 = vmatpush1.bf16.msra.mxu0 %v716
    %1179 = vmatprep.subr.bf16.mxu0 %v725
    %1180 = vmatpush1.bf16.msra.mxu0 %v724
    %1181 = vmatprep.subr.bf16.mxu0 %v733
    %1182 = vmatpush1.bf16.msra.mxu0 %v732
    %1183 = vmatprep.subr.bf16.mxu0 %v741
    %1184 = vmatpush1.bf16.msra.mxu0 %v740
    %1185 = vmatprep.mubr.bf16.mxu0 %v68
    %1186 = vmatmul.mubr.bf16.gmra.mrb[0].mxu0 %v67
    %v1187 = vpop.f32.mrb[0].mxu0
    %v1188 = vadd.f32 0.0, %v1187
    %v1189 = vpop.f32.mrb[0].mxu0
    %v1190 = vadd.f32 0.0, %v1189
    %v1191 = vpop.f32.mrb[0].mxu0
    %v1192 = vpop.f32.mrb[0].mxu0
    %1193 = vdwg.mxu0
    %1194 = vmatprep.subr.bf16.mxu0 %v905
    %1195 = vmatpush1.bf16.msra.mxu0 %v902
    %1196 = vmatprep.subr.bf16.mxu0 0
    %1197 = vmatpush1.bf16.msra.mxu0 0
    %1198 = vmatprep.subr.bf16.mxu0 0
    %1199 = vmatpush1.bf16.msra.mxu0 0
    %1200 = vmatprep.subr.bf16.mxu0 0
    %1201 = vmatpush1.bf16.msra.mxu0 0
    %1202 = vmatprep.subr.bf16.mxu0 0
    %1203 = vmatpush1.bf16.msra.mxu0 0
    %1204 = vmatprep.subr.bf16.mxu0 0
    %1205 = vmatpush1.bf16.msra.mxu0 0
    %1206 = vmatprep.subr.bf16.mxu0 0
    %1207 = vmatpush1.bf16.msra.mxu0 0
    %1208 = vmatprep.subr.bf16.mxu0 0
    %1209 = vmatpush1.bf16.msra.mxu0 0
    %1210 = vmatprep.subr.bf16.mxu0 0
    %1211 = vmatpush1.bf16.msra.mxu0 0
    %1212 = vmatprep.subr.bf16.mxu0 0
    %1213 = vmatpush1.bf16.msra.mxu0 0
    %1214 = vmatprep.subr.bf16.mxu0 0
    %1215 = vmatpush1.bf16.msra.mxu0 0
    %1216 = vmatprep.subr.bf16.mxu0 0
    %1217 = vmatpush1.bf16.msra.mxu0 0
    %1218 = vmatprep.subr.bf16.mxu0 0
    %1219 = vmatpush1.bf16.msra.mxu0 0
    %1220 = vmatprep.subr.bf16.mxu0 0
    %1221 = vmatpush1.bf16.msra.mxu0 0
    %1222 = vmatprep.subr.bf16.mxu0 0
    %1223 = vmatpush1.bf16.msra.mxu0 0
    %1224 = vmatprep.subr.bf16.mxu0 0
    %1225 = vmatpush1.bf16.msra.mxu0 0
    %1226 = vmatprep.mubr.bf16.mxu0 0
    %1227 = vmatmul.mubr.bf16.gmra.mrb[0].mxu0 %v880
    %v1228 = vpop.f32.mrb[0].mxu0
    %v1229 = vadd.f32 %v1188, %v1228
    %v1230 = vpop.f32.mrb[0].mxu0
    %v1231 = vadd.f32 %v1190, %v1230
    %v1232 = vpop.f32.mrb[0].mxu0
    %v1233 = vpop.f32.mrb[0].mxu0
    %1234 = vdwg.mxu0
    %v1235 = vmax.f32 %v983, %v1147
    %v1236 = vmax.f32 %v985, %v1149
    %v1237 = vmax.f32 %v1065, %v1229
    %v1238 = vmax.f32 %v1067, %v1231
    %v1239 = vld [vmem:[%s2] sm:$0xf]
    %v1241 = vlaneseq
    %v1242 = vshrl.u32 %v1241, 7
    %v1243 = vsub.s32 0, %v1242
    %v1244 = vrot.slane %v1239, %v1243
    %v1245 = vlaneseq
    %v1246 = vshrl.u32 %v1245, 7
    %v1247 = vsub.s32 1, %v1246
    %v1248 = vrot.slane %v1239, %v1247
    %v1249 = vlaneseq
    %v1250 = vshrl.u32 %v1249, 7
    %v1251 = vsub.s32 2, %v1250
    %v1252 = vrot.slane %v1239, %v1251
    %v1253 = vlaneseq
    %v1254 = vshrl.u32 %v1253, 7
    %v1255 = vsub.s32 3, %v1254
    %v1256 = vrot.slane %v1239, %v1255
    %v1261 = vadd.f32 %v1235, %v1244
    %v1262 = vadd.f32 %v1236, %v1248
    %v1263 = vadd.f32 %v1237, %v1252
    %v1264 = vadd.f32 %v1238, %v1256
    %v1265 = vmax.f32 %v1261, 0.0
    %v1266 = vmax.f32 %v1262, 0.0
    %v1267 = vmax.f32 %v1263, 0.0
    %v1268 = vmax.f32 %v1264, 0.0
    %v1269 = vpack.c.bf16 %v1265, %v1265
    %v1270 = vpack.c.bf16 %v1266, %v1266
    %v1271 = vpack.c.bf16 %v1267, %v1267
    %v1272 = vpack.c.bf16 %v1268, %v1268
    %v1273 = vld [vmem:[#allocation6] sm:$0xff]
    %v1274 = vld [vmem:[#allocation6 + $0x8] sm:$0xff]
    %v1275 = vld [vmem:[#allocation6 + $0x10] sm:$0xff]
    %v1276 = vld [vmem:[#allocation6 + $0x18] sm:$0xff]
    %v1277 = vld [vmem:[#allocation6 + $0x20] sm:$0xff]
    %v1278 = vld [vmem:[#allocation6 + $0x28] sm:$0xff]
    %v1279 = vld [vmem:[#allocation6 + $0x30] sm:$0xff]
    %v1280 = vld [vmem:[#allocation6 + $0x38] sm:$0xff]
    %v1281 = vld [vmem:[#allocation6 + $0x40] sm:$0xff]
    %v1282 = vld [vmem:[#allocation6 + $0x48] sm:$0xff]
    %v1283 = vld [vmem:[#allocation6 + $0x50] sm:$0xff]
    %v1284 = vld [vmem:[#allocation6 + $0x58] sm:$0xff]
    %v1285 = vld [vmem:[#allocation6 + $0x60] sm:$0xff]
    %v1286 = vld [vmem:[#allocation6 + $0x68] sm:$0xff]
    %v1287 = vld [vmem:[#allocation6 + $0x70] sm:$0xff]
    %v1288 = vld [vmem:[#allocation6 + $0x78] sm:$0xff]
    %v1289 = vld [vmem:[#allocation6 + $0x80] sm:$0xff]
    %v1290 = vld [vmem:[#allocation6 + $0x88] sm:$0xff]
    %v1291 = vld [vmem:[#allocation6 + $0x90] sm:$0xff]
    %v1292 = vld [vmem:[#allocation6 + $0x98] sm:$0xff]
    %v1293 = vld [vmem:[#allocation6 + $0xa0] sm:$0xff]
    %v1294 = vld [vmem:[#allocation6 + $0xa8] sm:$0xff]
    %v1295 = vld [vmem:[#allocation6 + $0xb0] sm:$0xff]
    %v1296 = vld [vmem:[#allocation6 + $0xb8] sm:$0xff]
    %v1297 = vld [vmem:[#allocation6 + $0xc0] sm:$0xff]
    %v1298 = vld [vmem:[#allocation6 + $0xc8] sm:$0xff]
    %v1299 = vld [vmem:[#allocation6 + $0xd0] sm:$0xff]
    %v1300 = vld [vmem:[#allocation6 + $0xd8] sm:$0xff]
    %v1301 = vld [vmem:[#allocation6 + $0xe0] sm:$0xff]
    %v1302 = vld [vmem:[#allocation6 + $0xe8] sm:$0xff]
    %v1303 = vld [vmem:[#allocation6 + $0xf0] sm:$0xff]
    %v1304 = vld [vmem:[#allocation6 + $0xf8] sm:$0xff]
    %v1305 = vld [vmem:[#allocation6 + $0x100] sm:$0xff]
    %v1306 = vld [vmem:[#allocation6 + $0x108] sm:$0xff]
    %v1307 = vld [vmem:[#allocation6 + $0x110] sm:$0xff]
    %v1308 = vld [vmem:[#allocation6 + $0x118] sm:$0xff]
    %v1309 = vld [vmem:[#allocation6 + $0x120] sm:$0xff]
    %v1310 = vld [vmem:[#allocation6 + $0x128] sm:$0xff]
    %v1311 = vld [vmem:[#allocation6 + $0x130] sm:$0xff]
    %v1312 = vld [vmem:[#allocation6 + $0x138] sm:$0xff]
    %v1313 = vld [vmem:[#allocation6 + $0x140] sm:$0xff]
    %v1314 = vld [vmem:[#allocation6 + $0x148] sm:$0xff]
    %v1315 = vld [vmem:[#allocation6 + $0x150] sm:$0xff]
    %v1316 = vld [vmem:[#allocation6 + $0x158] sm:$0xff]
    %v1317 = vld [vmem:[#allocation6 + $0x160] sm:$0xff]
    %v1318 = vld [vmem:[#allocation6 + $0x168] sm:$0xff]
    %v1319 = vld [vmem:[#allocation6 + $0x170] sm:$0xff]
    %v1320 = vld [vmem:[#allocation6 + $0x178] sm:$0xff]
    %v1321 = vld [vmem:[#allocation6 + $0x180] sm:$0xff]
    %v1322 = vld [vmem:[#allocation6 + $0x188] sm:$0xff]
    %v1323 = vld [vmem:[#allocation6 + $0x190] sm:$0xff]
    %v1324 = vld [vmem:[#allocation6 + $0x198] sm:$0xff]
    %v1325 = vld [vmem:[#allocation6 + $0x1a0] sm:$0xff]
    %v1326 = vld [vmem:[#allocation6 + $0x1a8] sm:$0xff]
    %v1327 = vld [vmem:[#allocation6 + $0x1b0] sm:$0xff]
    %v1328 = vld [vmem:[#allocation6 + $0x1b8] sm:$0xff]
    %v1329 = vld [vmem:[#allocation6 + $0x1c0] sm:$0xff]
    %v1330 = vld [vmem:[#allocation6 + $0x1c8] sm:$0xff]
    %v1331 = vld [vmem:[#allocation6 + $0x1d0] sm:$0xff]
    %v1332 = vld [vmem:[#allocation6 + $0x1d8] sm:$0xff]
    %v1333 = vld [vmem:[#allocation6 + $0x1e0] sm:$0xff]
    %v1334 = vld [vmem:[#allocation6 + $0x1e8] sm:$0xff]
    %v1335 = vld [vmem:[#allocation6 + $0x1f0] sm:$0xff]
    %v1336 = vld [vmem:[#allocation6 + $0x1f8] sm:$0xff]
    %v1337 = vld [vmem:[#allocation6 + $0x200] sm:$0xff]
    %v1338 = vld [vmem:[#allocation6 + $0x208] sm:$0xff]
    %v1339 = vld [vmem:[#allocation6 + $0x210] sm:$0xff]
    %v1340 = vld [vmem:[#allocation6 + $0x218] sm:$0xff]
    %v1341 = vld [vmem:[#allocation6 + $0x220] sm:$0xff]
    %v1342 = vld [vmem:[#allocation6 + $0x228] sm:$0xff]
    %v1343 = vld [vmem:[#allocation6 + $0x230] sm:$0xff]
    %v1344 = vld [vmem:[#allocation6 + $0x238] sm:$0xff]
    %v1345 = vld [vmem:[#allocation6 + $0x240] sm:$0xff]
    %v1346 = vld [vmem:[#allocation6 + $0x248] sm:$0xff]
    %v1347 = vld [vmem:[#allocation6 + $0x250] sm:$0xff]
    %v1348 = vld [vmem:[#allocation6 + $0x258] sm:$0xff]
    %v1349 = vld [vmem:[#allocation6 + $0x260] sm:$0xff]
    %v1350 = vld [vmem:[#allocation6 + $0x268] sm:$0xff]
    %v1351 = vld [vmem:[#allocation6 + $0x270] sm:$0xff]
    %v1352 = vld [vmem:[#allocation6 + $0x278] sm:$0xff]
    %v1353 = vld [vmem:[#allocation6 + $0x280] sm:$0xff]
    %v1354 = vld [vmem:[#allocation6 + $0x288] sm:$0xff]
    %v1355 = vld [vmem:[#allocation6 + $0x290] sm:$0xff]
    %v1356 = vld [vmem:[#allocation6 + $0x298] sm:$0xff]
    %v1357 = vld [vmem:[#allocation6 + $0x2a0] sm:$0xff]
    %v1358 = vld [vmem:[#allocation6 + $0x2a8] sm:$0xff]
    %v1359 = vld [vmem:[#allocation6 + $0x2b0] sm:$0xff]
    %v1360 = vld [vmem:[#allocation6 + $0x2b8] sm:$0xff]
    %v1361 = vld [vmem:[#allocation6 + $0x2c0] sm:$0xff]
    %v1362 = vld [vmem:[#allocation6 + $0x2c8] sm:$0xff]
    %v1363 = vld [vmem:[#allocation6 + $0x2d0] sm:$0xff]
    %v1364 = vld [vmem:[#allocation6 + $0x2d8] sm:$0xff]
    %v1365 = vld [vmem:[#allocation6 + $0x2e0] sm:$0xff]
    %v1366 = vld [vmem:[#allocation6 + $0x2e8] sm:$0xff]
    %v1367 = vld [vmem:[#allocation6 + $0x2f0] sm:$0xff]
    %v1368 = vld [vmem:[#allocation6 + $0x2f8] sm:$0xff]
    %v1369 = vld [vmem:[#allocation6 + $0x300] sm:$0xff]
    %v1370 = vld [vmem:[#allocation6 + $0x308] sm:$0xff]
    %v1371 = vld [vmem:[#allocation6 + $0x310] sm:$0xff]
    %v1372 = vld [vmem:[#allocation6 + $0x318] sm:$0xff]
    %v1373 = vld [vmem:[#allocation6 + $0x320] sm:$0xff]
    %v1374 = vld [vmem:[#allocation6 + $0x328] sm:$0xff]
    %v1375 = vld [vmem:[#allocation6 + $0x330] sm:$0xff]
    %v1376 = vld [vmem:[#allocation6 + $0x338] sm:$0xff]
    %v1377 = vld [vmem:[#allocation6 + $0x340] sm:$0xff]
    %v1378 = vld [vmem:[#allocation6 + $0x348] sm:$0xff]
    %v1379 = vld [vmem:[#allocation6 + $0x350] sm:$0xff]
    %v1380 = vld [vmem:[#allocation6 + $0x358] sm:$0xff]
    %v1381 = vld [vmem:[#allocation6 + $0x360] sm:$0xff]
    %v1382 = vld [vmem:[#allocation6 + $0x368] sm:$0xff]
    %v1383 = vld [vmem:[#allocation6 + $0x370] sm:$0xff]
    %v1384 = vld [vmem:[#allocation6 + $0x378] sm:$0xff]
    %v1385 = vld [vmem:[#allocation6 + $0x380] sm:$0xff]
    %v1386 = vld [vmem:[#allocation6 + $0x388] sm:$0xff]
    %v1387 = vld [vmem:[#allocation6 + $0x390] sm:$0xff]
    %v1388 = vld [vmem:[#allocation6 + $0x398] sm:$0xff]
    %v1389 = vld [vmem:[#allocation6 + $0x3a0] sm:$0xff]
    %v1390 = vld [vmem:[#allocation6 + $0x3a8] sm:$0xff]
    %v1391 = vld [vmem:[#allocation6 + $0x3b0] sm:$0xff]
    %v1392 = vld [vmem:[#allocation6 + $0x3b8] sm:$0xff]
    %v1393 = vld [vmem:[#allocation6 + $0x3c0] sm:$0xff]
    %v1394 = vld [vmem:[#allocation6 + $0x3c8] sm:$0xff]
    %v1395 = vld [vmem:[#allocation6 + $0x3d0] sm:$0xff]
    %v1396 = vld [vmem:[#allocation6 + $0x3d8] sm:$0xff]
    %v1397 = vld [vmem:[#allocation6 + $0x3e0] sm:$0xff]
    %v1398 = vld [vmem:[#allocation6 + $0x3e8] sm:$0xff]
    %v1399 = vld [vmem:[#allocation6 + $0x3f0] sm:$0xff]
    %v1400 = vld [vmem:[#allocation6 + $0x3f8] sm:$0xff]
    %v1401 = vld [vmem:[#allocation6 + $0x400] sm:$0xff]
    %v1402 = vld [vmem:[#allocation6 + $0x408] sm:$0xff]
    %v1403 = vld [vmem:[#allocation6 + $0x410] sm:$0xff]
    %v1404 = vld [vmem:[#allocation6 + $0x418] sm:$0xff]
    %v1405 = vld [vmem:[#allocation6 + $0x420] sm:$0xff]
    %v1406 = vld [vmem:[#allocation6 + $0x428] sm:$0xff]
    %v1407 = vld [vmem:[#allocation6 + $0x430] sm:$0xff]
    %v1408 = vld [vmem:[#allocation6 + $0x438] sm:$0xff]
    %v1409 = vld [vmem:[#allocation6 + $0x440] sm:$0xff]
    %v1410 = vld [vmem:[#allocation6 + $0x448] sm:$0xff]
    %v1411 = vld [vmem:[#allocation6 + $0x450] sm:$0xff]
    %v1412 = vld [vmem:[#allocation6 + $0x458] sm:$0xff]
    %v1413 = vld [vmem:[#allocation6 + $0x460] sm:$0xff]
    %v1414 = vld [vmem:[#allocation6 + $0x468] sm:$0xff]
    %v1415 = vld [vmem:[#allocation6 + $0x470] sm:$0xff]
    %v1416 = vld [vmem:[#allocation6 + $0x478] sm:$0xff]
    %v1417 = vld [vmem:[#allocation6 + $0x480] sm:$0xff]
    %v1418 = vld [vmem:[#allocation6 + $0x488] sm:$0xff]
    %v1419 = vld [vmem:[#allocation6 + $0x490] sm:$0xff]
    %v1420 = vld [vmem:[#allocation6 + $0x498] sm:$0xff]
    %v1421 = vld [vmem:[#allocation6 + $0x4a0] sm:$0xff]
    %v1422 = vld [vmem:[#allocation6 + $0x4a8] sm:$0xff]
    %v1423 = vld [vmem:[#allocation6 + $0x4b0] sm:$0xff]
    %v1424 = vld [vmem:[#allocation6 + $0x4b8] sm:$0xff]
    %v1425 = vld [vmem:[#allocation6 + $0x4c0] sm:$0xff]
    %v1426 = vld [vmem:[#allocation6 + $0x4c8] sm:$0xff]
    %v1427 = vld [vmem:[#allocation6 + $0x4d0] sm:$0xff]
    %v1428 = vld [vmem:[#allocation6 + $0x4d8] sm:$0xff]
    %v1429 = vld [vmem:[#allocation6 + $0x4e0] sm:$0xff]
    %v1430 = vld [vmem:[#allocation6 + $0x4e8] sm:$0xff]
    %v1431 = vld [vmem:[#allocation6 + $0x4f0] sm:$0xff]
    %v1432 = vld [vmem:[#allocation6 + $0x4f8] sm:$0xff]
    %v1433 = vld [vmem:[#allocation6 + $0x500] sm:$0xff]
    %v1434 = vld [vmem:[#allocation6 + $0x508] sm:$0xff]
    %v1435 = vld [vmem:[#allocation6 + $0x510] sm:$0xff]
    %v1436 = vld [vmem:[#allocation6 + $0x518] sm:$0xff]
    %v1437 = vld [vmem:[#allocation6 + $0x520] sm:$0xff]
    %v1438 = vld [vmem:[#allocation6 + $0x528] sm:$0xff]
    %v1439 = vld [vmem:[#allocation6 + $0x530] sm:$0xff]
    %v1440 = vld [vmem:[#allocation6 + $0x538] sm:$0xff]
    %v1441 = vld [vmem:[#allocation6 + $0x540] sm:$0xff]
    %v1442 = vld [vmem:[#allocation6 + $0x548] sm:$0xff]
    %v1443 = vld [vmem:[#allocation6 + $0x550] sm:$0xff]
    %v1444 = vld [vmem:[#allocation6 + $0x558] sm:$0xff]
    %v1445 = vld [vmem:[#allocation6 + $0x560] sm:$0xff]
    %v1446 = vld [vmem:[#allocation6 + $0x568] sm:$0xff]
    %v1447 = vld [vmem:[#allocation6 + $0x570] sm:$0xff]
    %v1448 = vld [vmem:[#allocation6 + $0x578] sm:$0xff]
    %v1449 = vld [vmem:[#allocation6 + $0x580] sm:$0xff]
    %v1450 = vld [vmem:[#allocation6 + $0x588] sm:$0xff]
    %v1451 = vld [vmem:[#allocation6 + $0x590] sm:$0xff]
    %v1452 = vld [vmem:[#allocation6 + $0x598] sm:$0xff]
    %v1453 = vld [vmem:[#allocation6 + $0x5a0] sm:$0xff]
    %v1454 = vld [vmem:[#allocation6 + $0x5a8] sm:$0xff]
    %v1455 = vld [vmem:[#allocation6 + $0x5b0] sm:$0xff]
    %v1456 = vld [vmem:[#allocation6 + $0x5b8] sm:$0xff]
    %v1457 = vld [vmem:[#allocation6 + $0x5c0] sm:$0xff]
    %v1458 = vld [vmem:[#allocation6 + $0x5c8] sm:$0xff]
    %v1459 = vld [vmem:[#allocation6 + $0x5d0] sm:$0xff]
    %v1460 = vld [vmem:[#allocation6 + $0x5d8] sm:$0xff]
    %v1461 = vld [vmem:[#allocation6 + $0x5e0] sm:$0xff]
    %v1462 = vld [vmem:[#allocation6 + $0x5e8] sm:$0xff]
    %v1463 = vld [vmem:[#allocation6 + $0x5f0] sm:$0xff]
    %v1464 = vld [vmem:[#allocation6 + $0x5f8] sm:$0xff]
    %v1657 = vunpack.c.l.b16 %v1273
    %v1658 = vunpack.c.h.b16 %v1273
    %v1659 = vunpack.c.l.b16 %v1274
    %v1660 = vunpack.c.h.b16 %v1274
    %v1661 = vunpack.c.l.b16 %v1275
    %v1662 = vunpack.c.h.b16 %v1275
    %v1663 = vunpack.c.l.b16 %v1276
    %v1664 = vunpack.c.h.b16 %v1276
    %v1665 = vunpack.c.l.b16 %v1277
    %v1666 = vunpack.c.h.b16 %v1277
    %v1667 = vunpack.c.l.b16 %v1278
    %v1668 = vunpack.c.h.b16 %v1278
    %v1669 = vunpack.c.l.b16 %v1279
    %v1670 = vunpack.c.h.b16 %v1279
    %v1671 = vunpack.c.l.b16 %v1280
    %v1672 = vunpack.c.h.b16 %v1280
    %v1673 = vunpack.c.l.b16 %v1281
    %v1674 = vunpack.c.h.b16 %v1281
    %v1675 = vunpack.c.l.b16 %v1282
    %v1676 = vunpack.c.h.b16 %v1282
    %v1677 = vunpack.c.l.b16 %v1283
    %v1678 = vunpack.c.h.b16 %v1283
    %v1679 = vunpack.c.l.b16 %v1284
    %v1680 = vunpack.c.h.b16 %v1284
    %v1681 = vunpack.c.l.b16 %v1285
    %v1682 = vunpack.c.h.b16 %v1285
    %v1683 = vunpack.c.l.b16 %v1286
    %v1684 = vunpack.c.h.b16 %v1286
    %v1685 = vunpack.c.l.b16 %v1287
    %v1686 = vunpack.c.h.b16 %v1287
    %v1687 = vunpack.c.l.b16 %v1288
    %v1688 = vunpack.c.h.b16 %v1288
    %v1689 = vunpack.c.l.b16 %v1289
    %v1690 = vunpack.c.h.b16 %v1289
    %v1691 = vunpack.c.l.b16 %v1290
    %v1692 = vunpack.c.h.b16 %v1290
    %v1693 = vunpack.c.l.b16 %v1291
    %v1694 = vunpack.c.h.b16 %v1291
    %v1695 = vunpack.c.l.b16 %v1292
    %v1696 = vunpack.c.h.b16 %v1292
    %v1697 = vunpack.c.l.b16 %v1293
    %v1698 = vunpack.c.h.b16 %v1293
    %v1699 = vunpack.c.l.b16 %v1294
    %v1700 = vunpack.c.h.b16 %v1294
    %v1701 = vunpack.c.l.b16 %v1295
    %v1702 = vunpack.c.h.b16 %v1295
    %v1703 = vunpack.c.l.b16 %v1296
    %v1704 = vunpack.c.h.b16 %v1296
    %v1705 = vunpack.c.l.b16 %v1297
    %v1706 = vunpack.c.h.b16 %v1297
    %v1707 = vunpack.c.l.b16 %v1298
    %v1708 = vunpack.c.h.b16 %v1298
    %v1709 = vunpack.c.l.b16 %v1299
    %v1710 = vunpack.c.h.b16 %v1299
    %v1711 = vunpack.c.l.b16 %v1300
    %v1712 = vunpack.c.h.b16 %v1300
    %v1713 = vunpack.c.l.b16 %v1301
    %v1714 = vunpack.c.h.b16 %v1301
    %v1715 = vunpack.c.l.b16 %v1302
    %v1716 = vunpack.c.h.b16 %v1302
    %v1717 = vunpack.c.l.b16 %v1303
    %v1718 = vunpack.c.h.b16 %v1303
    %v1719 = vunpack.c.l.b16 %v1304
    %v1720 = vunpack.c.h.b16 %v1304
    %v1721 = vunpack.c.l.b16 %v1305
    %v1722 = vunpack.c.h.b16 %v1305
    %v1723 = vunpack.c.l.b16 %v1306
    %v1724 = vunpack.c.h.b16 %v1306
    %v1725 = vunpack.c.l.b16 %v1307
    %v1726 = vunpack.c.h.b16 %v1307
    %v1727 = vunpack.c.l.b16 %v1308
    %v1728 = vunpack.c.h.b16 %v1308
    %v1729 = vunpack.c.l.b16 %v1309
    %v1730 = vunpack.c.h.b16 %v1309
    %v1731 = vunpack.c.l.b16 %v1310
    %v1732 = vunpack.c.h.b16 %v1310
    %v1733 = vunpack.c.l.b16 %v1311
    %v1734 = vunpack.c.h.b16 %v1311
    %v1735 = vunpack.c.l.b16 %v1312
    %v1736 = vunpack.c.h.b16 %v1312
    %v1737 = vunpack.c.l.b16 %v1313
    %v1738 = vunpack.c.h.b16 %v1313
    %v1739 = vunpack.c.l.b16 %v1314
    %v1740 = vunpack.c.h.b16 %v1314
    %v1741 = vunpack.c.l.b16 %v1315
    %v1742 = vunpack.c.h.b16 %v1315
    %v1743 = vunpack.c.l.b16 %v1316
    %v1744 = vunpack.c.h.b16 %v1316
    %v1745 = vunpack.c.l.b16 %v1317
    %v1746 = vunpack.c.h.b16 %v1317
    %v1747 = vunpack.c.l.b16 %v1318
    %v1748 = vunpack.c.h.b16 %v1318
    %v1749 = vunpack.c.l.b16 %v1319
    %v1750 = vunpack.c.h.b16 %v1319
    %v1751 = vunpack.c.l.b16 %v1320
    %v1752 = vunpack.c.h.b16 %v1320
    %v1753 = vunpack.c.l.b16 %v1321
    %v1754 = vunpack.c.h.b16 %v1321
    %v1755 = vunpack.c.l.b16 %v1322
    %v1756 = vunpack.c.h.b16 %v1322
    %v1757 = vunpack.c.l.b16 %v1323
    %v1758 = vunpack.c.h.b16 %v1323
    %v1759 = vunpack.c.l.b16 %v1324
    %v1760 = vunpack.c.h.b16 %v1324
    %v1761 = vunpack.c.l.b16 %v1325
    %v1762 = vunpack.c.h.b16 %v1325
    %v1763 = vunpack.c.l.b16 %v1326
    %v1764 = vunpack.c.h.b16 %v1326
    %v1765 = vunpack.c.l.b16 %v1327
    %v1766 = vunpack.c.h.b16 %v1327
    %v1767 = vunpack.c.l.b16 %v1328
    %v1768 = vunpack.c.h.b16 %v1328
    %v1769 = vunpack.c.l.b16 %v1329
    %v1770 = vunpack.c.h.b16 %v1329
    %v1771 = vunpack.c.l.b16 %v1330
    %v1772 = vunpack.c.h.b16 %v1330
    %v1773 = vunpack.c.l.b16 %v1331
    %v1774 = vunpack.c.h.b16 %v1331
    %v1775 = vunpack.c.l.b16 %v1332
    %v1776 = vunpack.c.h.b16 %v1332
    %v1777 = vunpack.c.l.b16 %v1333
    %v1778 = vunpack.c.h.b16 %v1333
    %v1779 = vunpack.c.l.b16 %v1334
    %v1780 = vunpack.c.h.b16 %v1334
    %v1781 = vunpack.c.l.b16 %v1335
    %v1782 = vunpack.c.h.b16 %v1335
    %v1783 = vunpack.c.l.b16 %v1336
    %v1784 = vunpack.c.h.b16 %v1336
    %v1785 = vunpack.c.l.b16 %v1337
    %v1786 = vunpack.c.h.b16 %v1337
    %v1787 = vunpack.c.l.b16 %v1338
    %v1788 = vunpack.c.h.b16 %v1338
    %v1789 = vunpack.c.l.b16 %v1339
    %v1790 = vunpack.c.h.b16 %v1339
    %v1791 = vunpack.c.l.b16 %v1340
    %v1792 = vunpack.c.h.b16 %v1340
    %v1793 = vunpack.c.l.b16 %v1341
    %v1794 = vunpack.c.h.b16 %v1341
    %v1795 = vunpack.c.l.b16 %v1342
    %v1796 = vunpack.c.h.b16 %v1342
    %v1797 = vunpack.c.l.b16 %v1343
    %v1798 = vunpack.c.h.b16 %v1343
    %v1799 = vunpack.c.l.b16 %v1344
    %v1800 = vunpack.c.h.b16 %v1344
    %v1801 = vunpack.c.l.b16 %v1345
    %v1802 = vunpack.c.h.b16 %v1345
    %v1803 = vunpack.c.l.b16 %v1346
    %v1804 = vunpack.c.h.b16 %v1346
    %v1805 = vunpack.c.l.b16 %v1347
    %v1806 = vunpack.c.h.b16 %v1347
    %v1807 = vunpack.c.l.b16 %v1348
    %v1808 = vunpack.c.h.b16 %v1348
    %v1809 = vunpack.c.l.b16 %v1349
    %v1810 = vunpack.c.h.b16 %v1349
    %v1811 = vunpack.c.l.b16 %v1350
    %v1812 = vunpack.c.h.b16 %v1350
    %v1813 = vunpack.c.l.b16 %v1351
    %v1814 = vunpack.c.h.b16 %v1351
    %v1815 = vunpack.c.l.b16 %v1352
    %v1816 = vunpack.c.h.b16 %v1352
    %v1817 = vunpack.c.l.b16 %v1353
    %v1818 = vunpack.c.h.b16 %v1353
    %v1819 = vunpack.c.l.b16 %v1354
    %v1820 = vunpack.c.h.b16 %v1354
    %v1821 = vunpack.c.l.b16 %v1355
    %v1822 = vunpack.c.h.b16 %v1355
    %v1823 = vunpack.c.l.b16 %v1356
    %v1824 = vunpack.c.h.b16 %v1356
    %v1825 = vunpack.c.l.b16 %v1357
    %v1826 = vunpack.c.h.b16 %v1357
    %v1827 = vunpack.c.l.b16 %v1358
    %v1828 = vunpack.c.h.b16 %v1358
    %v1829 = vunpack.c.l.b16 %v1359
    %v1830 = vunpack.c.h.b16 %v1359
    %v1831 = vunpack.c.l.b16 %v1360
    %v1832 = vunpack.c.h.b16 %v1360
    %v1833 = vunpack.c.l.b16 %v1361
    %v1834 = vunpack.c.h.b16 %v1361
    %v1835 = vunpack.c.l.b16 %v1362
    %v1836 = vunpack.c.h.b16 %v1362
    %v1837 = vunpack.c.l.b16 %v1363
    %v1838 = vunpack.c.h.b16 %v1363
    %v1839 = vunpack.c.l.b16 %v1364
    %v1840 = vunpack.c.h.b16 %v1364
    %v1841 = vunpack.c.l.b16 %v1365
    %v1842 = vunpack.c.h.b16 %v1365
    %v1843 = vunpack.c.l.b16 %v1366
    %v1844 = vunpack.c.h.b16 %v1366
    %v1845 = vunpack.c.l.b16 %v1367
    %v1846 = vunpack.c.h.b16 %v1367
    %v1847 = vunpack.c.l.b16 %v1368
    %v1848 = vunpack.c.h.b16 %v1368
    %v1849 = vunpack.c.l.b16 %v1369
    %v1850 = vunpack.c.h.b16 %v1369
    %v1851 = vunpack.c.l.b16 %v1370
    %v1852 = vunpack.c.h.b16 %v1370
    %v1853 = vunpack.c.l.b16 %v1371
    %v1854 = vunpack.c.h.b16 %v1371
    %v1855 = vunpack.c.l.b16 %v1372
    %v1856 = vunpack.c.h.b16 %v1372
    %v1857 = vunpack.c.l.b16 %v1373
    %v1858 = vunpack.c.h.b16 %v1373
    %v1859 = vunpack.c.l.b16 %v1374
    %v1860 = vunpack.c.h.b16 %v1374
    %v1861 = vunpack.c.l.b16 %v1375
    %v1862 = vunpack.c.h.b16 %v1375
    %v1863 = vunpack.c.l.b16 %v1376
    %v1864 = vunpack.c.h.b16 %v1376
    %v1865 = vunpack.c.l.b16 %v1377
    %v1866 = vunpack.c.h.b16 %v1377
    %v1867 = vunpack.c.l.b16 %v1378
    %v1868 = vunpack.c.h.b16 %v1378
    %v1869 = vunpack.c.l.b16 %v1379
    %v1870 = vunpack.c.h.b16 %v1379
    %v1871 = vunpack.c.l.b16 %v1380
    %v1872 = vunpack.c.h.b16 %v1380
    %v1873 = vunpack.c.l.b16 %v1381
    %v1874 = vunpack.c.h.b16 %v1381
    %v1875 = vunpack.c.l.b16 %v1382
    %v1876 = vunpack.c.h.b16 %v1382
    %v1877 = vunpack.c.l.b16 %v1383
    %v1878 = vunpack.c.h.b16 %v1383
    %v1879 = vunpack.c.l.b16 %v1384
    %v1880 = vunpack.c.h.b16 %v1384
    %v1881 = vunpack.c.l.b16 %v1385
    %v1882 = vunpack.c.h.b16 %v1385
    %v1883 = vunpack.c.l.b16 %v1386
    %v1884 = vunpack.c.h.b16 %v1386
    %v1885 = vunpack.c.l.b16 %v1387
    %v1886 = vunpack.c.h.b16 %v1387
    %v1887 = vunpack.c.l.b16 %v1388
    %v1888 = vunpack.c.h.b16 %v1388
    %v1889 = vunpack.c.l.b16 %v1389
    %v1890 = vunpack.c.h.b16 %v1389
    %v1891 = vunpack.c.l.b16 %v1390
    %v1892 = vunpack.c.h.b16 %v1390
    %v1893 = vunpack.c.l.b16 %v1391
    %v1894 = vunpack.c.h.b16 %v1391
    %v1895 = vunpack.c.l.b16 %v1392
    %v1896 = vunpack.c.h.b16 %v1392
    %v1897 = vunpack.c.l.b16 %v1393
    %v1898 = vunpack.c.h.b16 %v1393
    %v1899 = vunpack.c.l.b16 %v1394
    %v1900 = vunpack.c.h.b16 %v1394
    %v1901 = vunpack.c.l.b16 %v1395
    %v1902 = vunpack.c.h.b16 %v1395
    %v1903 = vunpack.c.l.b16 %v1396
    %v1904 = vunpack.c.h.b16 %v1396
    %v1905 = vunpack.c.l.b16 %v1397
    %v1906 = vunpack.c.h.b16 %v1397
    %v1907 = vunpack.c.l.b16 %v1398
    %v1908 = vunpack.c.h.b16 %v1398
    %v1909 = vunpack.c.l.b16 %v1399
    %v1910 = vunpack.c.h.b16 %v1399
    %v1911 = vunpack.c.l.b16 %v1400
    %v1912 = vunpack.c.h.b16 %v1400
    %v1913 = vunpack.c.l.b16 %v1401
    %v1914 = vunpack.c.h.b16 %v1401
    %v1915 = vunpack.c.l.b16 %v1402
    %v1916 = vunpack.c.h.b16 %v1402
    %v1917 = vunpack.c.l.b16 %v1403
    %v1918 = vunpack.c.h.b16 %v1403
    %v1919 = vunpack.c.l.b16 %v1404
    %v1920 = vunpack.c.h.b16 %v1404
    %v1921 = vunpack.c.l.b16 %v1405
    %v1922 = vunpack.c.h.b16 %v1405
    %v1923 = vunpack.c.l.b16 %v1406
    %v1924 = vunpack.c.h.b16 %v1406
    %v1925 = vunpack.c.l.b16 %v1407
    %v1926 = vunpack.c.h.b16 %v1407
    %v1927 = vunpack.c.l.b16 %v1408
    %v1928 = vunpack.c.h.b16 %v1408
    %v1929 = vunpack.c.l.b16 %v1409
    %v1930 = vunpack.c.h.b16 %v1409
    %v1931 = vunpack.c.l.b16 %v1410
    %v1932 = vunpack.c.h.b16 %v1410
    %v1933 = vunpack.c.l.b16 %v1411
    %v1934 = vunpack.c.h.b16 %v1411
    %v1935 = vunpack.c.l.b16 %v1412
    %v1936 = vunpack.c.h.b16 %v1412
    %v1937 = vunpack.c.l.b16 %v1413
    %v1938 = vunpack.c.h.b16 %v1413
    %v1939 = vunpack.c.l.b16 %v1414
    %v1940 = vunpack.c.h.b16 %v1414
    %v1941 = vunpack.c.l.b16 %v1415
    %v1942 = vunpack.c.h.b16 %v1415
    %v1943 = vunpack.c.l.b16 %v1416
    %v1944 = vunpack.c.h.b16 %v1416
    %v1945 = vunpack.c.l.b16 %v1417
    %v1946 = vunpack.c.h.b16 %v1417
    %v1947 = vunpack.c.l.b16 %v1418
    %v1948 = vunpack.c.h.b16 %v1418
    %v1949 = vunpack.c.l.b16 %v1419
    %v1950 = vunpack.c.h.b16 %v1419
    %v1951 = vunpack.c.l.b16 %v1420
    %v1952 = vunpack.c.h.b16 %v1420
    %v1953 = vunpack.c.l.b16 %v1421
    %v1954 = vunpack.c.h.b16 %v1421
    %v1955 = vunpack.c.l.b16 %v1422
    %v1956 = vunpack.c.h.b16 %v1422
    %v1957 = vunpack.c.l.b16 %v1423
    %v1958 = vunpack.c.h.b16 %v1423
    %v1959 = vunpack.c.l.b16 %v1424
    %v1960 = vunpack.c.h.b16 %v1424
    %v1961 = vunpack.c.l.b16 %v1425
    %v1962 = vunpack.c.h.b16 %v1425
    %v1963 = vunpack.c.l.b16 %v1426
    %v1964 = vunpack.c.h.b16 %v1426
    %v1965 = vunpack.c.l.b16 %v1427
    %v1966 = vunpack.c.h.b16 %v1427
    %v1967 = vunpack.c.l.b16 %v1428
    %v1968 = vunpack.c.h.b16 %v1428
    %v1969 = vunpack.c.l.b16 %v1429
    %v1970 = vunpack.c.h.b16 %v1429
    %v1971 = vunpack.c.l.b16 %v1430
    %v1972 = vunpack.c.h.b16 %v1430
    %v1973 = vunpack.c.l.b16 %v1431
    %v1974 = vunpack.c.h.b16 %v1431
    %v1975 = vunpack.c.l.b16 %v1432
    %v1976 = vunpack.c.h.b16 %v1432
    %v1977 = vunpack.c.l.b16 %v1433
    %v1978 = vunpack.c.h.b16 %v1433
    %v1979 = vunpack.c.l.b16 %v1434
    %v1980 = vunpack.c.h.b16 %v1434
    %v1981 = vunpack.c.l.b16 %v1435
    %v1982 = vunpack.c.h.b16 %v1435
    %v1983 = vunpack.c.l.b16 %v1436
    %v1984 = vunpack.c.h.b16 %v1436
    %v1985 = vunpack.c.l.b16 %v1437
    %v1986 = vunpack.c.h.b16 %v1437
    %v1987 = vunpack.c.l.b16 %v1438
    %v1988 = vunpack.c.h.b16 %v1438
    %v1989 = vunpack.c.l.b16 %v1439
    %v1990 = vunpack.c.h.b16 %v1439
    %v1991 = vunpack.c.l.b16 %v1440
    %v1992 = vunpack.c.h.b16 %v1440
    %v1993 = vunpack.c.l.b16 %v1441
    %v1994 = vunpack.c.h.b16 %v1441
    %v1995 = vunpack.c.l.b16 %v1442
    %v1996 = vunpack.c.h.b16 %v1442
    %v1997 = vunpack.c.l.b16 %v1443
    %v1998 = vunpack.c.h.b16 %v1443
    %v1999 = vunpack.c.l.b16 %v1444
    %v2000 = vunpack.c.h.b16 %v1444
    %v2001 = vunpack.c.l.b16 %v1445
    %v2002 = vunpack.c.h.b16 %v1445
    %v2003 = vunpack.c.l.b16 %v1446
    %v2004 = vunpack.c.h.b16 %v1446
    %v2005 = vunpack.c.l.b16 %v1447
    %v2006 = vunpack.c.h.b16 %v1447
    %v2007 = vunpack.c.l.b16 %v1448
    %v2008 = vunpack.c.h.b16 %v1448
    %v2009 = vunpack.c.l.b16 %v1449
    %v2010 = vunpack.c.h.b16 %v1449
    %v2011 = vunpack.c.l.b16 %v1450
    %v2012 = vunpack.c.h.b16 %v1450
    %v2013 = vunpack.c.l.b16 %v1451
    %v2014 = vunpack.c.h.b16 %v1451
    %v2015 = vunpack.c.l.b16 %v1452
    %v2016 = vunpack.c.h.b16 %v1452
    %v2017 = vunpack.c.l.b16 %v1453
    %v2018 = vunpack.c.h.b16 %v1453
    %v2019 = vunpack.c.l.b16 %v1454
    %v2020 = vunpack.c.h.b16 %v1454
    %v2021 = vunpack.c.l.b16 %v1455
    %v2022 = vunpack.c.h.b16 %v1455
    %v2023 = vunpack.c.l.b16 %v1456
    %v2024 = vunpack.c.h.b16 %v1456
    %v2025 = vunpack.c.l.b16 %v1457
    %v2026 = vunpack.c.h.b16 %v1457
    %v2027 = vunpack.c.l.b16 %v1458
    %v2028 = vunpack.c.h.b16 %v1458
    %v2029 = vunpack.c.l.b16 %v1459
    %v2030 = vunpack.c.h.b16 %v1459
    %v2031 = vunpack.c.l.b16 %v1460
    %v2032 = vunpack.c.h.b16 %v1460
    %v2033 = vunpack.c.l.b16 %v1461
    %v2034 = vunpack.c.h.b16 %v1461
    %v2035 = vunpack.c.l.b16 %v1462
    %v2036 = vunpack.c.h.b16 %v1462
    %v2037 = vunpack.c.l.b16 %v1463
    %v2038 = vunpack.c.h.b16 %v1463
    %v2039 = vunpack.c.l.b16 %v1464
    %v2040 = vunpack.c.h.b16 %v1464
    %v2041 = vpack.c.b16 %v1663, %v1657
    %v2042 = vpack.c.b16 %v1664, %v1658
    %v2043 = vpack.c.b16 %v1665, %v1659
    %v2044 = vpack.c.b16 %v1666, %v1660
    %v2045 = vpack.c.b16 %v1667, %v1661
    %v2046 = vpack.c.b16 %v1668, %v1662
    %v2047 = vpack.c.b16 %v1675, %v1669
    %v2048 = vpack.c.b16 %v1676, %v1670
    %v2049 = vpack.c.b16 %v1677, %v1671
    %v2050 = vpack.c.b16 %v1678, %v1672
    %v2051 = vpack.c.b16 %v1679, %v1673
    %v2052 = vpack.c.b16 %v1680, %v1674
    %v2053 = vpack.c.b16 %v1687, %v1681
    %v2054 = vpack.c.b16 %v1688, %v1682
    %v2055 = vpack.c.b16 %v1689, %v1683
    %v2056 = vpack.c.b16 %v1690, %v1684
    %v2057 = vpack.c.b16 %v1691, %v1685
    %v2058 = vpack.c.b16 %v1692, %v1686
    %v2059 = vpack.c.b16 %v1699, %v1693
    %v2060 = vpack.c.b16 %v1700, %v1694
    %v2061 = vpack.c.b16 %v1701, %v1695
    %v2062 = vpack.c.b16 %v1702, %v1696
    %v2063 = vpack.c.b16 %v1703, %v1697
    %v2064 = vpack.c.b16 %v1704, %v1698
    %v2065 = vpack.c.b16 %v1711, %v1705
    %v2066 = vpack.c.b16 %v1712, %v1706
    %v2067 = vpack.c.b16 %v1713, %v1707
    %v2068 = vpack.c.b16 %v1714, %v1708
    %v2069 = vpack.c.b16 %v1715, %v1709
    %v2070 = vpack.c.b16 %v1716, %v1710
    %v2071 = vpack.c.b16 %v1723, %v1717
    %v2072 = vpack.c.b16 %v1724, %v1718
    %v2073 = vpack.c.b16 %v1725, %v1719
    %v2074 = vpack.c.b16 %v1726, %v1720
    %v2075 = vpack.c.b16 %v1727, %v1721
    %v2076 = vpack.c.b16 %v1728, %v1722
    %v2077 = vpack.c.b16 %v1735, %v1729
    %v2078 = vpack.c.b16 %v1736, %v1730
    %v2079 = vpack.c.b16 %v1737, %v1731
    %v2080 = vpack.c.b16 %v1738, %v1732
    %v2081 = vpack.c.b16 %v1739, %v1733
    %v2082 = vpack.c.b16 %v1740, %v1734
    %v2083 = vpack.c.b16 %v1747, %v1741
    %v2084 = vpack.c.b16 %v1748, %v1742
    %v2085 = vpack.c.b16 %v1749, %v1743
    %v2086 = vpack.c.b16 %v1750, %v1744
    %v2087 = vpack.c.b16 %v1751, %v1745
    %v2088 = vpack.c.b16 %v1752, %v1746
    %v2089 = vpack.c.b16 %v1759, %v1753
    %v2090 = vpack.c.b16 %v1760, %v1754
    %v2091 = vpack.c.b16 %v1761, %v1755
    %v2092 = vpack.c.b16 %v1762, %v1756
    %v2093 = vpack.c.b16 %v1763, %v1757
    %v2094 = vpack.c.b16 %v1764, %v1758
    %v2095 = vpack.c.b16 %v1771, %v1765
    %v2096 = vpack.c.b16 %v1772, %v1766
    %v2097 = vpack.c.b16 %v1773, %v1767
    %v2098 = vpack.c.b16 %v1774, %v1768
    %v2099 = vpack.c.b16 %v1775, %v1769
    %v2100 = vpack.c.b16 %v1776, %v1770
    %v2101 = vpack.c.b16 %v1783, %v1777
    %v2102 = vpack.c.b16 %v1784, %v1778
    %v2103 = vpack.c.b16 %v1785, %v1779
    %v2104 = vpack.c.b16 %v1786, %v1780
    %v2105 = vpack.c.b16 %v1787, %v1781
    %v2106 = vpack.c.b16 %v1788, %v1782
    %v2107 = vpack.c.b16 %v1795, %v1789
    %v2108 = vpack.c.b16 %v1796, %v1790
    %v2109 = vpack.c.b16 %v1797, %v1791
    %v2110 = vpack.c.b16 %v1798, %v1792
    %v2111 = vpack.c.b16 %v1799, %v1793
    %v2112 = vpack.c.b16 %v1800, %v1794
    %v2113 = vpack.c.b16 %v1807, %v1801
    %v2114 = vpack.c.b16 %v1808, %v1802
    %v2115 = vpack.c.b16 %v1809, %v1803
    %v2116 = vpack.c.b16 %v1810, %v1804
    %v2117 = vpack.c.b16 %v1811, %v1805
    %v2118 = vpack.c.b16 %v1812, %v1806
    %v2119 = vpack.c.b16 %v1819, %v1813
    %v2120 = vpack.c.b16 %v1820, %v1814
    %v2121 = vpack.c.b16 %v1821, %v1815
    %v2122 = vpack.c.b16 %v1822, %v1816
    %v2123 = vpack.c.b16 %v1823, %v1817
    %v2124 = vpack.c.b16 %v1824, %v1818
    %v2125 = vpack.c.b16 %v1831, %v1825
    %v2126 = vpack.c.b16 %v1832, %v1826
    %v2127 = vpack.c.b16 %v1833, %v1827
    %v2128 = vpack.c.b16 %v1834, %v1828
    %v2129 = vpack.c.b16 %v1835, %v1829
    %v2130 = vpack.c.b16 %v1836, %v1830
    %v2131 = vpack.c.b16 %v1843, %v1837
    %v2132 = vpack.c.b16 %v1844, %v1838
    %v2133 = vpack.c.b16 %v1845, %v1839
    %v2134 = vpack.c.b16 %v1846, %v1840
    %v2135 = vpack.c.b16 %v1847, %v1841
    %v2136 = vpack.c.b16 %v1848, %v1842
    %v2137 = vpack.c.b16 %v1855, %v1849
    %v2138 = vpack.c.b16 %v1856, %v1850
    %v2139 = vpack.c.b16 %v1857, %v1851
    %v2140 = vpack.c.b16 %v1858, %v1852
    %v2141 = vpack.c.b16 %v1859, %v1853
    %v2142 = vpack.c.b16 %v1860, %v1854
    %v2143 = vpack.c.b16 %v1867, %v1861
    %v2144 = vpack.c.b16 %v1868, %v1862
    %v2145 = vpack.c.b16 %v1869, %v1863
    %v2146 = vpack.c.b16 %v1870, %v1864
    %v2147 = vpack.c.b16 %v1871, %v1865
    %v2148 = vpack.c.b16 %v1872, %v1866
    %v2149 = vpack.c.b16 %v1879, %v1873
    %v2150 = vpack.c.b16 %v1880, %v1874
    %v2151 = vpack.c.b16 %v1881, %v1875
    %v2152 = vpack.c.b16 %v1882, %v1876
    %v2153 = vpack.c.b16 %v1883, %v1877
    %v2154 = vpack.c.b16 %v1884, %v1878
    %v2155 = vpack.c.b16 %v1891, %v1885
    %v2156 = vpack.c.b16 %v1892, %v1886
    %v2157 = vpack.c.b16 %v1893, %v1887
    %v2158 = vpack.c.b16 %v1894, %v1888
    %v2159 = vpack.c.b16 %v1895, %v1889
    %v2160 = vpack.c.b16 %v1896, %v1890
    %v2161 = vpack.c.b16 %v1903, %v1897
    %v2162 = vpack.c.b16 %v1904, %v1898
    %v2163 = vpack.c.b16 %v1905, %v1899
    %v2164 = vpack.c.b16 %v1906, %v1900
    %v2165 = vpack.c.b16 %v1907, %v1901
    %v2166 = vpack.c.b16 %v1908, %v1902
    %v2167 = vpack.c.b16 %v1915, %v1909
    %v2168 = vpack.c.b16 %v1916, %v1910
    %v2169 = vpack.c.b16 %v1917, %v1911
    %v2170 = vpack.c.b16 %v1918, %v1912
    %v2171 = vpack.c.b16 %v1919, %v1913
    %v2172 = vpack.c.b16 %v1920, %v1914
    %v2173 = vpack.c.b16 %v1927, %v1921
    %v2174 = vpack.c.b16 %v1928, %v1922
    %v2175 = vpack.c.b16 %v1929, %v1923
    %v2176 = vpack.c.b16 %v1930, %v1924
    %v2177 = vpack.c.b16 %v1931, %v1925
    %v2178 = vpack.c.b16 %v1932, %v1926
    %v2179 = vpack.c.b16 %v1939, %v1933
    %v2180 = vpack.c.b16 %v1940, %v1934
    %v2181 = vpack.c.b16 %v1941, %v1935
    %v2182 = vpack.c.b16 %v1942, %v1936
    %v2183 = vpack.c.b16 %v1943, %v1937
    %v2184 = vpack.c.b16 %v1944, %v1938
    %v2185 = vpack.c.b16 %v1951, %v1945
    %v2186 = vpack.c.b16 %v1952, %v1946
    %v2187 = vpack.c.b16 %v1953, %v1947
    %v2188 = vpack.c.b16 %v1954, %v1948
    %v2189 = vpack.c.b16 %v1955, %v1949
    %v2190 = vpack.c.b16 %v1956, %v1950
    %v2191 = vpack.c.b16 %v1963, %v1957
    %v2192 = vpack.c.b16 %v1964, %v1958
    %v2193 = vpack.c.b16 %v1965, %v1959
    %v2194 = vpack.c.b16 %v1966, %v1960
    %v2195 = vpack.c.b16 %v1967, %v1961
    %v2196 = vpack.c.b16 %v1968, %v1962
    %v2197 = vpack.c.b16 %v1975, %v1969
    %v2198 = vpack.c.b16 %v1976, %v1970
    %v2199 = vpack.c.b16 %v1977, %v1971
    %v2200 = vpack.c.b16 %v1978, %v1972
    %v2201 = vpack.c.b16 %v1979, %v1973
    %v2202 = vpack.c.b16 %v1980, %v1974
    %v2203 = vpack.c.b16 %v1987, %v1981
    %v2204 = vpack.c.b16 %v1988, %v1982
    %v2205 = vpack.c.b16 %v1989, %v1983
    %v2206 = vpack.c.b16 %v1990, %v1984
    %v2207 = vpack.c.b16 %v1991, %v1985
    %v2208 = vpack.c.b16 %v1992, %v1986
    %v2209 = vpack.c.b16 %v1999, %v1993
    %v2210 = vpack.c.b16 %v2000, %v1994
    %v2211 = vpack.c.b16 %v2001, %v1995
    %v2212 = vpack.c.b16 %v2002, %v1996
    %v2213 = vpack.c.b16 %v2003, %v1997
    %v2214 = vpack.c.b16 %v2004, %v1998
    %v2215 = vpack.c.b16 %v2011, %v2005
    %v2216 = vpack.c.b16 %v2012, %v2006
    %v2217 = vpack.c.b16 %v2013, %v2007
    %v2218 = vpack.c.b16 %v2014, %v2008
    %v2219 = vpack.c.b16 %v2015, %v2009
    %v2220 = vpack.c.b16 %v2016, %v2010
    %v2221 = vpack.c.b16 %v2023, %v2017
    %v2222 = vpack.c.b16 %v2024, %v2018
    %v2223 = vpack.c.b16 %v2025, %v2019
    %v2224 = vpack.c.b16 %v2026, %v2020
    %v2225 = vpack.c.b16 %v2027, %v2021
    %v2226 = vpack.c.b16 %v2028, %v2022
    %v2227 = vpack.c.b16 %v2035, %v2029
    %v2228 = vpack.c.b16 %v2036, %v2030
    %v2229 = vpack.c.b16 %v2037, %v2031
    %v2230 = vpack.c.b16 %v2038, %v2032
    %v2231 = vpack.c.b16 %v2039, %v2033
    %v2232 = vpack.c.b16 %v2040, %v2034
    %2425 = vmatprep.subr.bf16.mxu0 %v2042
    %2426 = vmatpush1.bf16.msra.mxu0 %v2041
    %2427 = vmatprep.subr.bf16.mxu0 %v2048
    %2428 = vmatpush1.bf16.msra.mxu0 %v2047
    %2429 = vmatprep.subr.bf16.mxu0 %v2054
    %2430 = vmatpush1.bf16.msra.mxu0 %v2053
    %2431 = vmatprep.subr.bf16.mxu0 %v2060
    %2432 = vmatpush1.bf16.msra.mxu0 %v2059
    %2433 = vmatprep.subr.bf16.mxu0 %v2066
    %2434 = vmatpush1.bf16.msra.mxu0 %v2065
    %2435 = vmatprep.subr.bf16.mxu0 %v2072
    %2436 = vmatpush1.bf16.msra.mxu0 %v2071
    %2437 = vmatprep.subr.bf16.mxu0 %v2078
    %2438 = vmatpush1.bf16.msra.mxu0 %v2077
    %2439 = vmatprep.subr.bf16.mxu0 %v2084
    %2440 = vmatpush1.bf16.msra.mxu0 %v2083
    %2441 = vmatprep.subr.bf16.mxu0 %v2090
    %2442 = vmatpush1.bf16.msra.mxu0 %v2089
    %2443 = vmatprep.subr.bf16.mxu0 %v2096
    %2444 = vmatpush1.bf16.msra.mxu0 %v2095
    %2445 = vmatprep.subr.bf16.mxu0 %v2102
    %2446 = vmatpush1.bf16.msra.mxu0 %v2101
    %2447 = vmatprep.subr.bf16.mxu0 %v2108
    %2448 = vmatpush1.bf16.msra.mxu0 %v2107
    %2449 = vmatprep.subr.bf16.mxu0 %v2114
    %2450 = vmatpush1.bf16.msra.mxu0 %v2113
    %2451 = vmatprep.subr.bf16.mxu0 %v2120
    %2452 = vmatpush1.bf16.msra.mxu0 %v2119
    %2453 = vmatprep.subr.bf16.mxu0 %v2126
    %2454 = vmatpush1.bf16.msra.mxu0 %v2125
    %2455 = vmatprep.subr.bf16.mxu0 %v2132
    %2456 = vmatpush1.bf16.msra.mxu0 %v2131
    %2457 = vmatprep.mubr.bf16.mxu0 %v1270
    %2458 = vmatmul.mubr.bf16.gmra.mrb[0].mxu0 %v1269
    %v2459 = vpop.f32.mrb[0].mxu0
    %v2460 = vadd.f32 0.0, %v2459
    %v2461 = vpop.f32.mrb[0].mxu0
    %v2462 = vadd.f32 0.0, %v2461
    %v2463 = vpop.f32.mrb[0].mxu0
    %v2464 = vpop.f32.mrb[0].mxu0
    %2465 = vdwg.mxu0
    %2466 = vmatprep.subr.bf16.mxu0 %v2138
    %2467 = vmatpush1.bf16.msra.mxu0 %v2137
    %2468 = vmatprep.subr.bf16.mxu0 %v2144
    %2469 = vmatpush1.bf16.msra.mxu0 %v2143
    %2470 = vmatprep.subr.bf16.mxu0 %v2150
    %2471 = vmatpush1.bf16.msra.mxu0 %v2149
    %2472 = vmatprep.subr.bf16.mxu0 %v2156
    %2473 = vmatpush1.bf16.msra.mxu0 %v2155
    %2474 = vmatprep.subr.bf16.mxu0 %v2162
    %2475 = vmatpush1.bf16.msra.mxu0 %v2161
    %2476 = vmatprep.subr.bf16.mxu0 %v2168
    %2477 = vmatpush1.bf16.msra.mxu0 %v2167
    %2478 = vmatprep.subr.bf16.mxu0 %v2174
    %2479 = vmatpush1.bf16.msra.mxu0 %v2173
    %2480 = vmatprep.subr.bf16.mxu0 %v2180
    %2481 = vmatpush1.bf16.msra.mxu0 %v2179
    %2482 = vmatprep.subr.bf16.mxu0 %v2186
    %2483 = vmatpush1.bf16.msra.mxu0 %v2185
    %2484 = vmatprep.subr.bf16.mxu0 %v2192
    %2485 = vmatpush1.bf16.msra.mxu0 %v2191
    %2486 = vmatprep.subr.bf16.mxu0 %v2198
    %2487 = vmatpush1.bf16.msra.mxu0 %v2197
    %2488 = vmatprep.subr.bf16.mxu0 %v2204
    %2489 = vmatpush1.bf16.msra.mxu0 %v2203
    %2490 = vmatprep.subr.bf16.mxu0 %v2210
    %2491 = vmatpush1.bf16.msra.mxu0 %v2209
    %2492 = vmatprep.subr.bf16.mxu0 %v2216
    %2493 = vmatpush1.bf16.msra.mxu0 %v2215
    %2494 = vmatprep.subr.bf16.mxu0 %v2222
    %2495 = vmatpush1.bf16.msra.mxu0 %v2221
    %2496 = vmatprep.subr.bf16.mxu0 %v2228
    %2497 = vmatpush1.bf16.msra.mxu0 %v2227
    %2498 = vmatprep.mubr.bf16.mxu0 %v1272
    %2499 = vmatmul.mubr.bf16.gmra.mrb[0].mxu0 %v1271
    %v2500 = vpop.f32.mrb[0].mxu0
    %v2501 = vadd.f32 %v2460, %v2500
    %v2502 = vpop.f32.mrb[0].mxu0
    %v2503 = vadd.f32 %v2462, %v2502
    %v2504 = vpop.f32.mrb[0].mxu0
    %v2505 = vpop.f32.mrb[0].mxu0
    %2506 = vdwg.mxu0
    %2507 = vmatprep.subr.bf16.mxu0 %v2044
    %2508 = vmatpush1.bf16.msra.mxu0 %v2043
    %2509 = vmatprep.subr.bf16.mxu0 %v2050
    %2510 = vmatpush1.bf16.msra.mxu0 %v2049
    %2511 = vmatprep.subr.bf16.mxu0 %v2056
    %2512 = vmatpush1.bf16.msra.mxu0 %v2055
    %2513 = vmatprep.subr.bf16.mxu0 %v2062
    %2514 = vmatpush1.bf16.msra.mxu0 %v2061
    %2515 = vmatprep.subr.bf16.mxu0 %v2068
    %2516 = vmatpush1.bf16.msra.mxu0 %v2067
    %2517 = vmatprep.subr.bf16.mxu0 %v2074
    %2518 = vmatpush1.bf16.msra.mxu0 %v2073
    %2519 = vmatprep.subr.bf16.mxu0 %v2080
    %2520 = vmatpush1.bf16.msra.mxu0 %v2079
    %2521 = vmatprep.subr.bf16.mxu0 %v2086
    %2522 = vmatpush1.bf16.msra.mxu0 %v2085
    %2523 = vmatprep.subr.bf16.mxu0 %v2092
    %2524 = vmatpush1.bf16.msra.mxu0 %v2091
    %2525 = vmatprep.subr.bf16.mxu0 %v2098
    %2526 = vmatpush1.bf16.msra.mxu0 %v2097
    %2527 = vmatprep.subr.bf16.mxu0 %v2104
    %2528 = vmatpush1.bf16.msra.mxu0 %v2103
    %2529 = vmatprep.subr.bf16.mxu0 %v2110
    %2530 = vmatpush1.bf16.msra.mxu0 %v2109
    %2531 = vmatprep.subr.bf16.mxu0 %v2116
    %2532 = vmatpush1.bf16.msra.mxu0 %v2115
    %2533 = vmatprep.subr.bf16.mxu0 %v2122
    %2534 = vmatpush1.bf16.msra.mxu0 %v2121
    %2535 = vmatprep.subr.bf16.mxu0 %v2128
    %2536 = vmatpush1.bf16.msra.mxu0 %v2127
    %2537 = vmatprep.subr.bf16.mxu0 %v2134
    %2538 = vmatpush1.bf16.msra.mxu0 %v2133
    %2539 = vmatprep.mubr.bf16.mxu0 %v1270
    %2540 = vmatmul.mubr.bf16.gmra.mrb[0].mxu0 %v1269
    %v2541 = vpop.f32.mrb[0].mxu0
    %v2542 = vadd.f32 0.0, %v2541
    %v2543 = vpop.f32.mrb[0].mxu0
    %v2544 = vadd.f32 0.0, %v2543
    %v2545 = vpop.f32.mrb[0].mxu0
    %v2546 = vpop.f32.mrb[0].mxu0
    %2547 = vdwg.mxu0
    %2548 = vmatprep.subr.bf16.mxu0 %v2140
    %2549 = vmatpush1.bf16.msra.mxu0 %v2139
    %2550 = vmatprep.subr.bf16.mxu0 %v2146
    %2551 = vmatpush1.bf16.msra.mxu0 %v2145
    %2552 = vmatprep.subr.bf16.mxu0 %v2152
    %2553 = vmatpush1.bf16.msra.mxu0 %v2151
    %2554 = vmatprep.subr.bf16.mxu0 %v2158
    %2555 = vmatpush1.bf16.msra.mxu0 %v2157
    %2556 = vmatprep.subr.bf16.mxu0 %v2164
    %2557 = vmatpush1.bf16.msra.mxu0 %v2163
    %2558 = vmatprep.subr.bf16.mxu0 %v2170
    %2559 = vmatpush1.bf16.msra.mxu0 %v2169
    %2560 = vmatprep.subr.bf16.mxu0 %v2176
    %2561 = vmatpush1.bf16.msra.mxu0 %v2175
    %2562 = vmatprep.subr.bf16.mxu0 %v2182
    %2563 = vmatpush1.bf16.msra.mxu0 %v2181
    %2564 = vmatprep.subr.bf16.mxu0 %v2188
    %2565 = vmatpush1.bf16.msra.mxu0 %v2187
    %2566 = vmatprep.subr.bf16.mxu0 %v2194
    %2567 = vmatpush1.bf16.msra.mxu0 %v2193
    %2568 = vmatprep.subr.bf16.mxu0 %v2200
    %2569 = vmatpush1.bf16.msra.mxu0 %v2199
    %2570 = vmatprep.subr.bf16.mxu0 %v2206
    %2571 = vmatpush1.bf16.msra.mxu0 %v2205
    %2572 = vmatprep.subr.bf16.mxu0 %v2212
    %2573 = vmatpush1.bf16.msra.mxu0 %v2211
    %2574 = vmatprep.subr.bf16.mxu0 %v2218
    %2575 = vmatpush1.bf16.msra.mxu0 %v2217
    %2576 = vmatprep.subr.bf16.mxu0 %v2224
    %2577 = vmatpush1.bf16.msra.mxu0 %v2223
    %2578 = vmatprep.subr.bf16.mxu0 %v2230
    %2579 = vmatpush1.bf16.msra.mxu0 %v2229
    %2580 = vmatprep.mubr.bf16.mxu0 %v1272
    %2581 = vmatmul.mubr.bf16.gmra.mrb[0].mxu0 %v1271
    %v2582 = vpop.f32.mrb[0].mxu0
    %v2583 = vadd.f32 %v2542, %v2582
    %v2584 = vpop.f32.mrb[0].mxu0
    %v2585 = vadd.f32 %v2544, %v2584
    %v2586 = vpop.f32.mrb[0].mxu0
    %v2587 = vpop.f32.mrb[0].mxu0
    %2588 = vdwg.mxu0
    %2589 = vmatprep.subr.bf16.mxu0 %v2046
    %2590 = vmatpush1.bf16.msra.mxu0 %v2045
    %2591 = vmatprep.subr.bf16.mxu0 %v2052
    %2592 = vmatpush1.bf16.msra.mxu0 %v2051
    %2593 = vmatprep.subr.bf16.mxu0 %v2058
    %2594 = vmatpush1.bf16.msra.mxu0 %v2057
    %2595 = vmatprep.subr.bf16.mxu0 %v2064
    %2596 = vmatpush1.bf16.msra.mxu0 %v2063
    %2597 = vmatprep.subr.bf16.mxu0 %v2070
    %2598 = vmatpush1.bf16.msra.mxu0 %v2069
    %2599 = vmatprep.subr.bf16.mxu0 %v2076
    %2600 = vmatpush1.bf16.msra.mxu0 %v2075
    %2601 = vmatprep.subr.bf16.mxu0 %v2082
    %2602 = vmatpush1.bf16.msra.mxu0 %v2081
    %2603 = vmatprep.subr.bf16.mxu0 %v2088
    %2604 = vmatpush1.bf16.msra.mxu0 %v2087
    %2605 = vmatprep.subr.bf16.mxu0 %v2094
    %2606 = vmatpush1.bf16.msra.mxu0 %v2093
    %2607 = vmatprep.subr.bf16.mxu0 %v2100
    %2608 = vmatpush1.bf16.msra.mxu0 %v2099
    %2609 = vmatprep.subr.bf16.mxu0 %v2106
    %2610 = vmatpush1.bf16.msra.mxu0 %v2105
    %2611 = vmatprep.subr.bf16.mxu0 %v2112
    %2612 = vmatpush1.bf16.msra.mxu0 %v2111
    %2613 = vmatprep.subr.bf16.mxu0 %v2118
    %2614 = vmatpush1.bf16.msra.mxu0 %v2117
    %2615 = vmatprep.subr.bf16.mxu0 %v2124
    %2616 = vmatpush1.bf16.msra.mxu0 %v2123
    %2617 = vmatprep.subr.bf16.mxu0 %v2130
    %2618 = vmatpush1.bf16.msra.mxu0 %v2129
    %2619 = vmatprep.subr.bf16.mxu0 %v2136
    %2620 = vmatpush1.bf16.msra.mxu0 %v2135
    %2621 = vmatprep.mubr.bf16.mxu0 %v1270
    %2622 = vmatmul.mubr.bf16.gmra.mrb[0].mxu0 %v1269
    %v2623 = vpop.f32.mrb[0].mxu0
    %v2624 = vadd.f32 0.0, %v2623
    %v2625 = vpop.f32.mrb[0].mxu0
    %v2626 = vadd.f32 0.0, %v2625
    %v2627 = vpop.f32.mrb[0].mxu0
    %v2628 = vpop.f32.mrb[0].mxu0
    %2629 = vdwg.mxu0
    %2630 = vmatprep.subr.bf16.mxu0 %v2142
    %2631 = vmatpush1.bf16.msra.mxu0 %v2141
    %2632 = vmatprep.subr.bf16.mxu0 %v2148
    %2633 = vmatpush1.bf16.msra.mxu0 %v2147
    %2634 = vmatprep.subr.bf16.mxu0 %v2154
    %2635 = vmatpush1.bf16.msra.mxu0 %v2153
    %2636 = vmatprep.subr.bf16.mxu0 %v2160
    %2637 = vmatpush1.bf16.msra.mxu0 %v2159
    %2638 = vmatprep.subr.bf16.mxu0 %v2166
    %2639 = vmatpush1.bf16.msra.mxu0 %v2165
    %2640 = vmatprep.subr.bf16.mxu0 %v2172
    %2641 = vmatpush1.bf16.msra.mxu0 %v2171
    %2642 = vmatprep.subr.bf16.mxu0 %v2178
    %2643 = vmatpush1.bf16.msra.mxu0 %v2177
    %2644 = vmatprep.subr.bf16.mxu0 %v2184
    %2645 = vmatpush1.bf16.msra.mxu0 %v2183
    %2646 = vmatprep.subr.bf16.mxu0 %v2190
    %2647 = vmatpush1.bf16.msra.mxu0 %v2189
    %2648 = vmatprep.subr.bf16.mxu0 %v2196
    %2649 = vmatpush1.bf16.msra.mxu0 %v2195
    %2650 = vmatprep.subr.bf16.mxu0 %v2202
    %2651 = vmatpush1.bf16.msra.mxu0 %v2201
    %2652 = vmatprep.subr.bf16.mxu0 %v2208
    %2653 = vmatpush1.bf16.msra.mxu0 %v2207
    %2654 = vmatprep.subr.bf16.mxu0 %v2214
    %2655 = vmatpush1.bf16.msra.mxu0 %v2213
    %2656 = vmatprep.subr.bf16.mxu0 %v2220
    %2657 = vmatpush1.bf16.msra.mxu0 %v2219
    %2658 = vmatprep.subr.bf16.mxu0 %v2226
    %2659 = vmatpush1.bf16.msra.mxu0 %v2225
    %2660 = vmatprep.subr.bf16.mxu0 %v2232
    %2661 = vmatpush1.bf16.msra.mxu0 %v2231
    %2662 = vmatprep.mubr.bf16.mxu0 %v1272
    %2663 = vmatmul.mubr.bf16.gmra.mrb[0].mxu0 %v1271
    %v2664 = vpop.f32.mrb[0].mxu0
    %v2665 = vadd.f32 %v2624, %v2664
    %v2666 = vpop.f32.mrb[0].mxu0
    %v2667 = vadd.f32 %v2626, %v2666
    %v2668 = vpop.f32.mrb[0].mxu0
    %v2669 = vpop.f32.mrb[0].mxu0
    %2670 = vdwg.mxu0
    %v2671 = vmax.f32 %v2501, %v2585
    %v2672 = vmax.f32 %v2503, %v2665
    %v2673 = vmax.f32 %v2583, %v2667
    %v2674 = vld [vmem:[%s4] sm:$0x7]
    %v2676 = vlaneseq
    %v2677 = vshrl.u32 %v2676, 7
    %v2678 = vsub.s32 0, %v2677
    %v2679 = vrot.slane %v2674, %v2678
    %v2680 = vlaneseq
    %v2681 = vshrl.u32 %v2680, 7
    %v2682 = vsub.s32 1, %v2681
    %v2683 = vrot.slane %v2674, %v2682
    %v2684 = vlaneseq
    %v2685 = vshrl.u32 %v2684, 7
    %v2686 = vsub.s32 2, %v2685
    %v2687 = vrot.slane %v2674, %v2686
    %v2691 = vadd.f32 %v2671, %v2679
    %v2692 = vadd.f32 %v2672, %v2683
    %v2693 = vadd.f32 %v2673, %v2687
    %v2694 = vmax.f32 %v2691, 0.0
    %v2695 = vmax.f32 %v2692, 0.0
    %v2696 = vmax.f32 %v2693, 0.0
    %v2697 = vpack.c.bf16 %v2694, %v2694
    %v2698 = vpack.c.bf16 %v2695, %v2695
    %v2699 = vpack.c.bf16 %v2696, %v2696
    %v2700 = vld [vmem:[%s5] sm:$0xf]
    %v2701 = vld [vmem:[%s5 + $0x4] sm:$0xf]
    %v2702 = vld [vmem:[%s5 + $0x8] sm:$0xf]
    %v2703 = vld [vmem:[%s5 + $0xc] sm:$0xf]
    %v2704 = vld [vmem:[%s5 + $0x10] sm:$0xf]
    %v2705 = vld [vmem:[%s5 + $0x14] sm:$0xf]
    %v2706 = vld [vmem:[%s5 + $0x18] sm:$0xf]
    %v2707 = vld [vmem:[%s5 + $0x1c] sm:$0xf]
    %v2708 = vld [vmem:[%s5 + $0x20] sm:$0xf]
    %v2709 = vld [vmem:[%s5 + $0x24] sm:$0xf]
    %v2710 = vld [vmem:[%s5 + $0x28] sm:$0xf]
    %v2711 = vld [vmem:[%s5 + $0x2c] sm:$0xf]
    %v2712 = vld [vmem:[%s5 + $0x30] sm:$0xf]
    %v2713 = vld [vmem:[%s5 + $0x34] sm:$0xf]
    %v2714 = vld [vmem:[%s5 + $0x38] sm:$0xf]
    %v2715 = vld [vmem:[%s5 + $0x3c] sm:$0xf]
    %v2716 = vld [vmem:[%s5 + $0x40] sm:$0xf]
    %v2717 = vld [vmem:[%s5 + $0x44] sm:$0xf]
    %v2718 = vld [vmem:[%s5 + $0x48] sm:$0xf]
    %v2719 = vld [vmem:[%s5 + $0x4c] sm:$0xf]
    %v2720 = vld [vmem:[%s5 + $0x50] sm:$0xf]
    %v2721 = vld [vmem:[%s5 + $0x54] sm:$0xf]
    %v2722 = vld [vmem:[%s5 + $0x58] sm:$0xf]
    %v2723 = vld [vmem:[%s5 + $0x5c] sm:$0xf]
    %v2724 = vld [vmem:[%s5 + $0x60] sm:$0xf]
    %v2725 = vld [vmem:[%s5 + $0x64] sm:$0xf]
    %v2726 = vld [vmem:[%s5 + $0x68] sm:$0xf]
    %v2727 = vld [vmem:[%s5 + $0x6c] sm:$0xf]
    %v2728 = vld [vmem:[%s5 + $0x70] sm:$0xf]
    %v2729 = vld [vmem:[%s5 + $0x74] sm:$0xf]
    %v2730 = vld [vmem:[%s5 + $0x78] sm:$0xf]
    %v2731 = vld [vmem:[%s5 + $0x7c] sm:$0xf]
    %v2732 = vld [vmem:[%s5 + $0x80] sm:$0xf]
    %v2733 = vld [vmem:[%s5 + $0x84] sm:$0xf]
    %v2734 = vld [vmem:[%s5 + $0x88] sm:$0xf]
    %v2735 = vld [vmem:[%s5 + $0x8c] sm:$0xf]
    %v2736 = vld [vmem:[%s5 + $0x90] sm:$0xf]
    %v2737 = vld [vmem:[%s5 + $0x94] sm:$0xf]
    %v2738 = vld [vmem:[%s5 + $0x98] sm:$0xf]
    %v2739 = vld [vmem:[%s5 + $0x9c] sm:$0xf]
    %v2740 = vld [vmem:[%s5 + $0xa0] sm:$0xf]
    %v2741 = vld [vmem:[%s5 + $0xa4] sm:$0xf]
    %v2742 = vld [vmem:[%s5 + $0xa8] sm:$0xf]
    %v2743 = vld [vmem:[%s5 + $0xac] sm:$0xf]
    %v2744 = vld [vmem:[%s5 + $0xb0] sm:$0xf]
    %v2745 = vld [vmem:[%s5 + $0xb4] sm:$0xf]
    %v2746 = vld [vmem:[%s5 + $0xb8] sm:$0xf]
    %v2747 = vld [vmem:[%s5 + $0xbc] sm:$0xf]
    %v2748 = vld [vmem:[%s6] sm:$0x1]
    %v2750 = vlaneseq
    %v2751 = vshrl.u32 %v2750, 7
    %v2752 = vsub.s32 0, %v2751
    %v2753 = vrot.slane %v2748, %v2752
    %v2803 = vunpack.c.l.b16 %v2700
    %v2804 = vunpack.c.l.b16 %v2701
    %v2805 = vunpack.c.l.b16 %v2702
    %v2806 = vunpack.c.l.b16 %v2703
    %v2807 = vunpack.c.l.b16 %v2704
    %v2808 = vunpack.c.l.b16 %v2705
    %v2809 = vunpack.c.l.b16 %v2706
    %v2810 = vunpack.c.l.b16 %v2707
    %v2811 = vunpack.c.l.b16 %v2708
    %v2812 = vunpack.c.l.b16 %v2709
    %v2813 = vunpack.c.l.b16 %v2710
    %v2814 = vunpack.c.l.b16 %v2711
    %v2815 = vunpack.c.l.b16 %v2712
    %v2816 = vunpack.c.l.b16 %v2713
    %v2817 = vunpack.c.l.b16 %v2714
    %v2818 = vunpack.c.l.b16 %v2715
    %v2819 = vunpack.c.l.b16 %v2716
    %v2820 = vunpack.c.l.b16 %v2717
    %v2821 = vunpack.c.l.b16 %v2718
    %v2822 = vunpack.c.l.b16 %v2719
    %v2823 = vunpack.c.l.b16 %v2720
    %v2824 = vunpack.c.l.b16 %v2721
    %v2825 = vunpack.c.l.b16 %v2722
    %v2826 = vunpack.c.l.b16 %v2723
    %v2827 = vunpack.c.l.b16 %v2724
    %v2828 = vunpack.c.l.b16 %v2725
    %v2829 = vunpack.c.l.b16 %v2726
    %v2830 = vunpack.c.l.b16 %v2727
    %v2831 = vunpack.c.l.b16 %v2728
    %v2832 = vunpack.c.l.b16 %v2729
    %v2833 = vunpack.c.l.b16 %v2730
    %v2834 = vunpack.c.l.b16 %v2731
    %v2835 = vunpack.c.l.b16 %v2732
    %v2836 = vunpack.c.l.b16 %v2733
    %v2837 = vunpack.c.l.b16 %v2734
    %v2838 = vunpack.c.l.b16 %v2735
    %v2839 = vunpack.c.l.b16 %v2736
    %v2840 = vunpack.c.l.b16 %v2737
    %v2841 = vunpack.c.l.b16 %v2738
    %v2842 = vunpack.c.l.b16 %v2739
    %v2843 = vunpack.c.l.b16 %v2740
    %v2844 = vunpack.c.l.b16 %v2741
    %v2845 = vunpack.c.l.b16 %v2742
    %v2846 = vunpack.c.l.b16 %v2743
    %v2847 = vunpack.c.l.b16 %v2744
    %v2848 = vunpack.c.l.b16 %v2745
    %v2849 = vunpack.c.l.b16 %v2746
    %v2850 = vunpack.c.l.b16 %v2747
    %v2851 = vpack.c.b16 %v2804, %v2803
    %v2852 = vpack.c.b16 %v2806, %v2805
    %v2853 = vpack.c.b16 %v2808, %v2807
    %v2854 = vpack.c.b16 %v2810, %v2809
    %v2855 = vpack.c.b16 %v2812, %v2811
    %v2856 = vpack.c.b16 %v2814, %v2813
    %v2857 = vpack.c.b16 %v2816, %v2815
    %v2858 = vpack.c.b16 %v2818, %v2817
    %v2859 = vpack.c.b16 %v2820, %v2819
    %v2860 = vpack.c.b16 %v2822, %v2821
    %v2861 = vpack.c.b16 %v2824, %v2823
    %v2862 = vpack.c.b16 %v2826, %v2825
    %v2863 = vpack.c.b16 %v2828, %v2827
    %v2864 = vpack.c.b16 %v2830, %v2829
    %v2865 = vpack.c.b16 %v2832, %v2831
    %v2866 = vpack.c.b16 %v2834, %v2833
    %v2867 = vpack.c.b16 %v2836, %v2835
    %v2868 = vpack.c.b16 %v2838, %v2837
    %v2869 = vpack.c.b16 %v2840, %v2839
    %v2870 = vpack.c.b16 %v2842, %v2841
    %v2871 = vpack.c.b16 %v2844, %v2843
    %v2872 = vpack.c.b16 %v2846, %v2845
    %v2873 = vpack.c.b16 %v2848, %v2847
    %v2874 = vpack.c.b16 %v2850, %v2849
    %2899 = vmatprep.subr.bf16.mxu0 0
    %2900 = vmatpush1.bf16.msra.mxu0 %v2851
    %2901 = vmatprep.subr.bf16.mxu0 0
    %2902 = vmatpush1.bf16.msra.mxu0 %v2852
    %2903 = vmatprep.subr.bf16.mxu0 0
    %2904 = vmatpush1.bf16.msra.mxu0 %v2853
    %2905 = vmatprep.subr.bf16.mxu0 0
    %2906 = vmatpush1.bf16.msra.mxu0 %v2854
    %2907 = vmatprep.subr.bf16.mxu0 0
    %2908 = vmatpush1.bf16.msra.mxu0 %v2855
    %2909 = vmatprep.subr.bf16.mxu0 0
    %2910 = vmatpush1.bf16.msra.mxu0 %v2856
    %2911 = vmatprep.subr.bf16.mxu0 0
    %2912 = vmatpush1.bf16.msra.mxu0 %v2857
    %2913 = vmatprep.subr.bf16.mxu0 0
    %2914 = vmatpush1.bf16.msra.mxu0 %v2858
    %2915 = vmatprep.subr.bf16.mxu0 0
    %2916 = vmatpush1.bf16.msra.mxu0 %v2859
    %2917 = vmatprep.subr.bf16.mxu0 0
    %2918 = vmatpush1.bf16.msra.mxu0 %v2860
    %2919 = vmatprep.subr.bf16.mxu0 0
    %2920 = vmatpush1.bf16.msra.mxu0 %v2861
    %2921 = vmatprep.subr.bf16.mxu0 0
    %2922 = vmatpush1.bf16.msra.mxu0 %v2862
    %2923 = vmatprep.subr.bf16.mxu0 0
    %2924 = vmatpush1.bf16.msra.mxu0 %v2863
    %2925 = vmatprep.subr.bf16.mxu0 0
    %2926 = vmatpush1.bf16.msra.mxu0 %v2864
    %2927 = vmatprep.subr.bf16.mxu0 0
    %2928 = vmatpush1.bf16.msra.mxu0 %v2865
    %2929 = vmatprep.subr.bf16.mxu0 0
    %2930 = vmatpush1.bf16.msra.mxu0 %v2866
    %2931 = vmatprep.mubr.bf16.mxu0 %v2698
    %2932 = vmatmul.mubr.bf16.gmra.mrb[0].mxu0 %v2697
    %v2933 = vpop.f32.mrb[0].mxu0
    %v2934 = vadd.f32 %v2753, %v2933
    %v2935 = vpop.f32.mrb[0].mxu0
    %v2936 = vpop.f32.mrb[0].mxu0
    %v2937 = vpop.f32.mrb[0].mxu0
    %2938 = vdwg.mxu0
    %2939 = vmatprep.subr.bf16.mxu0 0
    %2940 = vmatpush1.bf16.msra.mxu0 %v2867
    %2941 = vmatprep.subr.bf16.mxu0 0
    %2942 = vmatpush1.bf16.msra.mxu0 %v2868
    %2943 = vmatprep.subr.bf16.mxu0 0
    %2944 = vmatpush1.bf16.msra.mxu0 %v2869
    %2945 = vmatprep.subr.bf16.mxu0 0
    %2946 = vmatpush1.bf16.msra.mxu0 %v2870
    %2947 = vmatprep.subr.bf16.mxu0 0
    %2948 = vmatpush1.bf16.msra.mxu0 %v2871
    %2949 = vmatprep.subr.bf16.mxu0 0
    %2950 = vmatpush1.bf16.msra.mxu0 %v2872
    %2951 = vmatprep.subr.bf16.mxu0 0
    %2952 = vmatpush1.bf16.msra.mxu0 %v2873
    %2953 = vmatprep.subr.bf16.mxu0 0
    %2954 = vmatpush1.bf16.msra.mxu0 %v2874
    %2955 = vmatprep.subr.bf16.mxu0 0
    %2956 = vmatpush1.bf16.msra.mxu0 0
    %2957 = vmatprep.subr.bf16.mxu0 0
    %2958 = vmatpush1.bf16.msra.mxu0 0
    %2959 = vmatprep.subr.bf16.mxu0 0
    %2960 = vmatpush1.bf16.msra.mxu0 0
    %2961 = vmatprep.subr.bf16.mxu0 0
    %2962 = vmatpush1.bf16.msra.mxu0 0
    %2963 = vmatprep.subr.bf16.mxu0 0
    %2964 = vmatpush1.bf16.msra.mxu0 0
    %2965 = vmatprep.subr.bf16.mxu0 0
    %2966 = vmatpush1.bf16.msra.mxu0 0
    %2967 = vmatprep.subr.bf16.mxu0 0
    %2968 = vmatpush1.bf16.msra.mxu0 0
    %2969 = vmatprep.subr.bf16.mxu0 0
    %2970 = vmatpush1.bf16.msra.mxu0 0
    %2971 = vmatprep.mubr.bf16.mxu0 0
    %2972 = vmatmul.mubr.bf16.gmra.mrb[0].mxu0 %v2699
    %v2973 = vpop.f32.mrb[0].mxu0
    %v2974 = vadd.f32 %v2934, %v2973
    %v2975 = vpop.f32.mrb[0].mxu0
    %v2976 = vpop.f32.mrb[0].mxu0
    %v2977 = vpop.f32.mrb[0].mxu0
    %2978 = vdwg.mxu0
    %v2979 = vmax.f32 %v2974, 0.0
    %v2980 = vpack.c.bf16 %v2979, %v2979
    %v2981 = vld [vmem:[%s7] sm:$0x1]
    %v2982 = vld [vmem:[#allocation2] sm:$0x1]
    %2984 = vset.pattern.permute.xlu0 0
    %2985 = vperm.xlu0 %2984, %v2982
    %v2986 = vpop.permute.xlu0 %2985
    %v2988 = vlaneseq
    %v2989 = vshrl.u32 %v2988, 7
    %v2990 = vsub.s32 0, %v2989
    %v2991 = vrot.slane %v2986, %v2990
    %vm2992 = vcmask 261120
    %v2994 = vsel %vm2992, %v2981, 0
    %v2997 = vsel %vm2992, %v2980, 0
    %2999 = vmatprep.subr.bf16.mxu0 0
    %3000 = vmatpush1.bf16.xpose.msra.mxu0 %v2997
    %3001 = vmatprep.subr.bf16.mxu0 0
    %3002 = vmatpush1.bf16.xpose.msra.mxu0 0
    %3003 = vmatprep.subr.bf16.mxu0 0
    %3004 = vmatpush1.bf16.xpose.msra.mxu0 0
    %3005 = vmatprep.subr.bf16.mxu0 0
    %3006 = vmatpush1.bf16.xpose.msra.mxu0 0
    %3007 = vmatprep.subr.bf16.mxu0 0
    %3008 = vmatpush1.bf16.xpose.msra.mxu0 0
    %3009 = vmatprep.subr.bf16.mxu0 0
    %3010 = vmatpush1.bf16.xpose.msra.mxu0 0
    %3011 = vmatprep.subr.bf16.mxu0 0
    %3012 = vmatpush1.bf16.xpose.msra.mxu0 0
    %3013 = vmatprep.subr.bf16.mxu0 0
    %3014 = vmatpush1.bf16.xpose.msra.mxu0 0
    %3015 = vmatprep.subr.bf16.mxu0 0
    %3016 = vmatpush1.bf16.xpose.msra.mxu0 0
    %3017 = vmatprep.subr.bf16.mxu0 0
    %3018 = vmatpush1.bf16.xpose.msra.mxu0 0
    %3019 = vmatprep.subr.bf16.mxu0 0
    %3020 = vmatpush1.bf16.xpose.msra.mxu0 0
    %3021 = vmatprep.subr.bf16.mxu0 0
    %3022 = vmatpush1.bf16.xpose.msra.mxu0 0
    %3023 = vmatprep.subr.bf16.mxu0 0
    %3024 = vmatpush1.bf16.xpose.msra.mxu0 0
    %3025 = vmatprep.subr.bf16.mxu0 0
    %3026 = vmatpush1.bf16.xpose.msra.mxu0 0
    %3027 = vmatprep.subr.bf16.mxu0 0
    %3028 = vmatpush1.bf16.xpose.msra.mxu0 0
    %3029 = vmatprep.subr.bf16.mxu0 0
    %3030 = vmatpush1.bf16.xpose.msra.mxu0 0
    %3031 = vmatprep.mubr.bf16.mxu0 0
    %3032 = vmatmul.mubr.bf16.gmra.mrb[0].mxu0 %v2994
    %v3033 = vpop.f32.mrb[0].mxu0
    %v3034 = vadd.f32 %v2991, %v3033
    %v3035 = vpop.f32.mrb[0].mxu0
    %v3036 = vpop.f32.mrb[0].mxu0
    %v3037 = vpop.f32.mrb[0].mxu0
    %3038 = vdwg.mxu0
    %v3039 = vmax.f32 %v3034, 0.0
    %vm3040 = vcmask 57344
    %3041 = vst.msk [vmem:[#allocation8] sm:$0x1] %vm3040, %v3039
    // Predicated region
    $region46: #{tpu_custom_call.1} parent=1 // pred_check
      _
    $region47: #{tpu_custom_call.1} parent=1 // pred_check_branch
      %3043 = sbr.rel (0) target = $region49
    $region48: #{tpu_custom_call.1} parent=1 // pred_region
      %s3045 = ssub.s32 16, 16
      %3046 = vsyncadd [#allocation5], %s3045
      %s3048 = sshll.u32 [#allocation8], 4
      %s3049 = int_to_ptr.vmem [resolvable:$true] %s3048
      %3051 = dma.vmem_to_hbm [thread:$0]  %s3049, 16, %s9, [#allocation5]
    $region49: #{tpu_custom_call.1} parent=1 // pred_fallthru
      _
    // Predicated region
    $region50: #{tpu_custom_call.1} parent=1 // pred_check
      _
    $region51: #{tpu_custom_call.1} parent=1 // pred_check_branch
      %3053 = sbr.rel (0) target = $region53
    $region52: #{tpu_custom_call.1} parent=1 // pred_region
      %3054 = dma.done [#allocation5], 16
    $region53: #{tpu_custom_call.1} parent=1 // pred_fallthru
      _
    %3055 = vsyncpa [#allocation4], 1
    %3056 = vsyncpa [#allocation7], 1
    %3057 = vsyncpa [#allocation5], 1

</llo_original>
